<compile_context>
chip_gen: v6e
topology: v6e:2x2x1
jax: 0.10.0
libtpu: 0.0.40
codegen_flags: <defaults>
</compile_context>

<pallas_src>
import functools
import math

import jax
import jax.numpy as jnp
from jax.experimental import pallas as pl
from jax.experimental.pallas import tpu as pltpu


def _pe_sin_kernel(y_ref, x_ref, out_ref):
    """out = sin(y_term + x_term).  Pure broadcast-add + EUP sin + store."""
    out_ref[...] = jnp.sin(y_ref[...] + x_ref[...]).astype(out_ref.dtype)


def _pick_tile_h(h, per_row_bytes, *, vmem_block_budget=4 << 20, min_grid_steps=4):
    """Rows per H-tile.

    Keeps the double-buffered output block well under every generation's scoped
    VMEM default (v5e 16 MiB, v6e/v7x 32 MiB) and caps rows so the grid has at
    least ~min_grid_steps steps (v7x megacore split + compute/DMA overlap).
    """
    rows = max(1, vmem_block_budget // max(per_row_bytes, 1))
    rows = min(rows, max(8, -(-h // min_grid_steps)))   # >= ~4 grid steps when h allows
    rows = min(rows, h)
    if rows >= 8:
        rows -= rows % 8                                 # keep (8,128)-friendly tiles
    return max(1, rows)


@functools.partial(jax.jit, static_argnames=("size", "channel_last", "out_dtype"))
def _position_embedding_random_impl(gaussian_matrix, size, channel_last, out_dtype):
    h, w = size
    g = gaussian_matrix.astype(jnp.float32)
    c = g.shape[1]
    two_c = 2 * c
    two_pi = 2.0 * math.pi
    out_bytes = jnp.dtype(out_dtype).itemsize

    # --- tiny rank-1 phase tables (folded into this one jitted graph) --------
    # torch: (cumsum - 0.5)/extent == (index + 0.5)/extent, then [0,1] -> [-1,1]
    xn = 2.0 * ((jnp.arange(w, dtype=jnp.float32) + 0.5) / w) - 1.0        # (w,)
    yn = 2.0 * ((jnp.arange(h, dtype=jnp.float32) + 0.5) / h) - 1.0        # (h,)
    gx2 = jnp.concatenate([g[0], g[0]])                                    # (2C,)
    gy2 = jnp.concatenate([g[1], g[1]])                                    # (2C,)
    off = jnp.concatenate(
        [jnp.zeros((c,), jnp.float32), jnp.full((c,), 0.5 * math.pi, jnp.float32)]
    )                                                                      # (2C,)
    x_term = two_pi * xn[:, None] * gx2[None, :]                           # (w, 2C)
    y_term = two_pi * yn[:, None] * gy2[None, :] + off[None, :]            # (h, 2C)

    # --- fast path: write torch's (2C, h, w) layout directly -----------------
    if (not channel_last) and (w % 128 == 0):
        y_t = jnp.transpose(y_term)[:, :, None]            # (2C, h, 1)
        x_t = jnp.transpose(x_term)[:, None, :]            # (2C, 1, w)
        tile_h = _pick_tile_h(h, two_c * w * out_bytes)
        grid = (pl.cdiv(h, tile_h),)
        return pl.pallas_call(
            _pe_sin_kernel,
            out_shape=jax.ShapeDtypeStruct((two_c, h, w), out_dtype),
            grid=grid,
            in_specs=[
                pl.BlockSpec((two_c, tile_h, 1), lambda i: (0, i, 0)),
                pl.BlockSpec((two_c, 1, w), lambda i: (0, 0, 0)),
            ],
            out_specs=pl.BlockSpec((two_c, tile_h, w), lambda i: (0, i, 0)),
            compiler_params=pltpu.CompilerParams(dimension_semantics=("parallel",)),
        )(y_t, x_t)

    # --- channel-last kernel (h, w, Cpad), lane dim padded to a 128-multiple --
    c_pad = max(128, ((two_c + 127) // 128) * 128)
    if c_pad != two_c:
        pad = ((0, 0), (0, c_pad - two_c))
        x_term = jnp.pad(x_term, pad)
        y_term = jnp.pad(y_term, pad)
    y_in = y_term[:, None, :]                               # (h, 1, Cpad)
    x_in = x_term[None, :, :]                               # (1, w, Cpad)
    tile_h = _pick_tile_h(h, w * c_pad * out_bytes)
    grid = (pl.cdiv(h, tile_h),)
    pe_hwc = pl.pallas_call(
        _pe_sin_kernel,
        out_shape=jax.ShapeDtypeStruct((h, w, c_pad), out_dtype),
        grid=grid,
        in_specs=[
            pl.BlockSpec((tile_h, 1, c_pad), lambda i: (i, 0, 0)),
            pl.BlockSpec((1, w, c_pad), lambda i: (0, 0, 0)),
        ],
        out_specs=pl.BlockSpec((tile_h, w, c_pad), lambda i: (i, 0, 0)),
        compiler_params=pltpu.CompilerParams(dimension_semantics=("parallel",)),
    )(y_in, x_in)
    if c_pad != two_c:
        pe_hwc = pe_hwc[:, :, :two_c]
    if channel_last:
        return pe_hwc
    # w not a 128-multiple: masked lane stores in a (2C,h,w) kernel would cost
    # more than this transpose, so the torch-layout permute stays out here.
    return jnp.transpose(pe_hwc, (2, 0, 1))


def position_embedding_random_forward(
    gaussian_matrix, size, *, channel_last=False, out_dtype=jnp.float32
):
    """Equivalent of PositionEmbeddingRandom.forward(size).

    Default returns (2C, h, w) to match torch; when w is a multiple of 128 that
    layout is written directly from the kernel (no HBM transpose pass).
    `channel_last=True` returns (h, w, 2C).  `out_dtype=jnp.bfloat16` halves
    HBM writeback for large grids on HBM-bound generations.
    """
    return _position_embedding_random_impl(
        gaussian_matrix,
        size=tuple(int(s) for s in size),
        channel_last=bool(channel_last),
        out_dtype=jnp.dtype(out_dtype),
    )


def _reference_forward(gaussian_matrix, size):
    """Pure-JAX reference mirroring the PyTorch module line-by-line."""
    h, w = size
    grid = jnp.ones((h, w), jnp.float32)
    y_embed = (jnp.cumsum(grid, axis=0) - 0.5) / h
    x_embed = (jnp.cumsum(grid, axis=1) - 0.5) / w
    coords = jnp.stack([x_embed, y_embed], axis=-1)
    coords = 2.0 * coords - 1.0
    coords = jnp.matmul(coords, gaussian_matrix, precision=jax.lax.Precision.HIGHEST)
    coords = 2.0 * jnp.pi * coords
    pe = jnp.concatenate([jnp.sin(coords), jnp.cos(coords)], axis=-1)
    return jnp.transpose(pe, (2, 0, 1))


# TODO(synk): forward_with_coords / _pe_encoding on arbitrary point coords is a
# trivial (N,2)x(2,C) matmul + sin/cos; not worth a dedicated Pallas kernel.

if __name__ == "__main__":
    key = jax.random.PRNGKey(0)

    # --- primary test: matches the torch module defaults (2C = 128 channels) --
    num_pos_feats = 64
    size = (16, 16)
    gaussian_matrix = jax.random.normal(key, (2, num_pos_feats), dtype=jnp.float32)

    pe = jax.block_until_ready(position_embedding_random_forward(gaussian_matrix, size))
    ref = _reference_forward(gaussian_matrix, size)
    assert pe.shape == (2 * num_pos_feats, size[0], size[1])
    assert pe.dtype == jnp.float32
    assert jnp.allclose(pe, ref, atol=5e-5, rtol=5e-5), float(jnp.max(jnp.abs(pe - ref)))

    # channel-last fast path — identical values, no transpose pass.
    pe_cl = jax.block_until_ready(
        position_embedding_random_forward(gaussian_matrix, size, channel_last=True)
    )
    assert pe_cl.shape == (size[0], size[1], 2 * num_pos_feats)
    assert jnp.allclose(jnp.transpose(pe_cl, (2, 0, 1)), ref, atol=5e-5, rtol=5e-5)

    # --- direct torch-layout path (w % 128 == 0): kernel writes (2C, h, w) ----
    size_wide = (16, 128)
    pe_wide = jax.block_until_ready(
        position_embedding_random_forward(gaussian_matrix, size_wide)
    )
    ref_wide = _reference_forward(gaussian_matrix, size_wide)
    assert pe_wide.shape == (2 * num_pos_feats, size_wide[0], size_wide[1])
    assert jnp.allclose(pe_wide, ref_wide, atol=5e-5, rtol=5e-5)

    # --- padded-channel path (2C not a 128-multiple) --------------------------
    gm_small = jax.random.normal(jax.random.PRNGKey(0), (2, 32), dtype=jnp.float32)
    pe_small = jax.block_until_ready(position_embedding_random_forward(gm_small, size))
    ref_small = _reference_forward(gm_small, size)
    assert pe_small.shape == (64, size[0], size[1])
    assert jnp.allclose(pe_small, ref_small, atol=5e-5, rtol=5e-5)

    print("KERNEL_OK")
</pallas_src>

<mosaic_0001>
module attributes {stable_mosaic.version = 11 : i64} {
  func.func @_pe_sin_kernel(%arg0: i32, %arg1: memref<8x1x128xf32, #tpu.memory_space<vmem>>, %arg2: memref<1x16x128xf32, #tpu.memory_space<vmem>>, %arg3: memref<8x16x128xf32, #tpu.memory_space<vmem>>) attributes {dimension_semantics = [#tpu.dimension_semantics<parallel>], iteration_bounds = array<i64: 2>, scalar_prefetch = 0 : i64, scratch_operands = 0 : i64, tpu.core_type = #tpu.core_type<tc>, window_params = [{transform_indices = @transform_0, window_bounds = array<i64: 8, 1, 128>}, {pipeline_mode = #tpu.pipeline_mode<synchronous>, transform_indices = @transform_1, window_bounds = array<i64: 1, 16, 128>}, {transform_indices = @transform_2, window_bounds = array<i64: 8, 16, 128>}]} {
    %c0 = arith.constant 0 : index
    %c0_0 = arith.constant 0 : index
    %c0_1 = arith.constant 0 : index
    %0 = vector.load %arg1[%c0, %c0_0, %c0_1] : memref<8x1x128xf32, #tpu.memory_space<vmem>>, vector<8x1x128xf32>
    %c0_2 = arith.constant 0 : index
    %c0_3 = arith.constant 0 : index
    %c0_4 = arith.constant 0 : index
    %1 = vector.load %arg2[%c0_2, %c0_3, %c0_4] : memref<1x16x128xf32, #tpu.memory_space<vmem>>, vector<1x16x128xf32>
    %2 = vector.broadcast %0 : vector<8x1x128xf32> to vector<8x16x128xf32>
    %3 = vector.broadcast %1 : vector<1x16x128xf32> to vector<8x16x128xf32>
    %4 = arith.addf %2, %3 : vector<8x16x128xf32>
    %5 = math.sin %4 : vector<8x16x128xf32>
    %c0_5 = arith.constant 0 : index
    %c0_6 = arith.constant 0 : index
    %c0_7 = arith.constant 0 : index
    %6 = vector.load %arg3[%c0_5, %c0_6, %c0_7] : memref<8x16x128xf32, #tpu.memory_space<vmem>>, vector<8x16x128xf32>
    tpu.vector_store %arg3[%c0_5, %c0_6, %c0_7], %5 {strides = array<i32>} : memref<8x16x128xf32, #tpu.memory_space<vmem>>, vector<8x16x128xf32>,
    return
  }
  func.func @transform_0(%arg0: i32) -> (i32, i32, i32) {
    %c0_i32 = arith.constant 0 : i32
    %c0_i32_0 = arith.constant 0 : i32
    %c0_i32_1 = arith.constant 0 : i32
    return %arg0, %c0_i32, %c0_i32_0 : i32, i32, i32
  }
  func.func @transform_1(%arg0: i32) -> (i32, i32, i32) {
    %c0_i32 = arith.constant 0 : i32
    %c0_i32_0 = arith.constant 0 : i32
    %c0_i32_1 = arith.constant 0 : i32
    %c0_i32_2 = arith.constant 0 : i32
    return %c0_i32, %c0_i32_0, %c0_i32_1 : i32, i32, i32
  }
  func.func @transform_2(%arg0: i32) -> (i32, i32, i32) {
    %c0_i32 = arith.constant 0 : i32
    %c0_i32_0 = arith.constant 0 : i32
    %c0_i32_1 = arith.constant 0 : i32
    return %arg0, %c0_i32, %c0_i32_0 : i32, i32, i32
  }
}

</mosaic_0001>

<llo_original>
// kernel: _position_embedding_random_impl.1
$region0: #{_position_embedding_random_impl.1}
  #allocation0 [shape = 'u32[]', space=smem, size = 0x4, offset = 0x4, fixed_abs, tag = 'smem constant byte address 0x4 - core index']
  #allocation1 [shape = 'u32[144,128]{1,0:T(1,128)}', space=vmem, size = 0x12000, scoped, tag = 'internal scratch']
  %s0 = inlined_call_operand.vmem [shape: f32[16,1,128], index: 0, kind: input, shape index: {}]
  %s1 = inlined_call_operand.vmem [shape: f32[1,16,128], index: 1, kind: input, shape index: {}]
  %s2 = inlined_call_operand.hbm [shape: f32[16,16,128], index: 2, kind: output, shape index: {}]
  %s3 = sld [smem:[#allocation0]]
  $region41: #{_position_embedding_random_impl.1} parent=0
    _
  %s5 = ssub.s32 1, %s3
  %s6 = scalar_select 0, %s5, %s3
  $region1: #{_position_embedding_random_impl.1} parent=0
    #allocation2 [shape = 'u8[131072]{0}', space=vmem, size = 0x20000, scoped, tag = 'output window, operand 0']
    #allocation3 [shape = 's32[2]{0}', space=sflag, size = 0x8, scoped, tag = 'scoped memory for _position_embedding_random_impl.1']
    %7 = vsyncpa [#allocation3], 0
    %s8 = scalar_lea.sflag [#allocation3], 1
    %9 = vsyncpa %s8, 0
    loop: start=0, step=1, limit=4
    $region2: #{_position_embedding_random_impl.1} parent=1 // loop_pre_header
      _
    $region3: #{_position_embedding_random_impl.1} parent=1 // loop_header
      %s11 = sphi 0, %s15
      %p12 = scmp.ge.s32.totalorder %s11, 4
      %s21 = sphi 0, %s23
      %s24 = sphi 0, %s21
      %s25 = sphi 0, %s24
      %s41 = sphi 0, %s25
      %s45 = sphi 0, %s45
      %s47 = sphi 0, %s45
      %s48 = sphi 0, %s47
      %s62 = sphi 0, %s48
      %s68 = sphi 0, %s70
      %s71 = sphi 0, %s68
      %s72 = sphi 0, %s71
      %s88 = sphi 0, %s72
    $region4: #{_position_embedding_random_impl.1} parent=1 // loop_header_branch
      %14 = sbr.rel (%p12) target = $region8
    $region5: #{_position_embedding_random_impl.1} parent=1 // loop_body
      %s16 = ssub.s32 %s11, 1
      %s17 = ssub.s32 %s11, 2
      %s18 = sadd.s32 %s11, 1
      %s19 = ssub.s32 %s11, %s18
      %p20 = scmp.eq.s32.totalorder %s19, 0
      %s22 = sadd.s32 %s21, 1
      %s23 = scalar_select %p20, %s21, %s22
      %p26 = pneg %p20
      %p27 = scmp.eq.s32.totalorder %s11, 1
      %p28 = por %p26, %p27
      %p29 = scmp.ne.s32.totalorder %s21, %s24
      %p30 = scmp.eq.s32.totalorder %s11, 0
      %p31 = por %p29, %p30
      %p32 = scmp.ne.s32.totalorder %s21, %s24
      %p33 = scmp.eq.s32.totalorder %s16, 1
      %p34 = por %p32, %p33
      %p35 = scmp.ne.s32.totalorder %s24, %s25
      %p36 = scmp.eq.s32.totalorder %s16, 0
      %p37 = por %p35, %p36
      %p38 = scmp.ne.s32.totalorder %s24, %s25
      %p39 = scmp.eq.s32.totalorder %s17, 1
      %p40 = por %p38, %p39
      %p42 = scmp.ne.s32.totalorder %s25, %s41
      %p43 = scmp.eq.s32.totalorder %s17, 0
      %p44 = por %p42, %p43
      %s46 = sadd.s32 %s45, 1
      %p49 = scmp.eq.s32.totalorder %s11, 1
      %p50 = scmp.ne.s32.totalorder %s45, %s47
      %p51 = scmp.eq.s32.totalorder %s11, 0
      %p52 = por %p50, %p51
      %p53 = scmp.ne.s32.totalorder %s45, %s47
      %p54 = scmp.eq.s32.totalorder %s16, 1
      %p55 = por %p53, %p54
      %p56 = scmp.ne.s32.totalorder %s47, %s48
      %p57 = scmp.eq.s32.totalorder %s16, 0
      %p58 = por %p56, %p57
      %p59 = scmp.ne.s32.totalorder %s47, %s48
      %p60 = scmp.eq.s32.totalorder %s17, 1
      %p61 = por %p59, %p60
      %p63 = scmp.ne.s32.totalorder %s48, %s62
      %p64 = scmp.eq.s32.totalorder %s17, 0
      %p65 = por %p63, %p64
      %s66 = ssub.s32 %s11, %s18
      %p67 = scmp.eq.s32.totalorder %s66, 0
      %s69 = sadd.s32 %s68, 1
      %s70 = scalar_select %p67, %s68, %s69
      %p73 = pneg %p67
      %p74 = scmp.eq.s32.totalorder %s11, 1
      %p75 = por %p73, %p74
      %p76 = scmp.ne.s32.totalorder %s68, %s71
      %p77 = scmp.eq.s32.totalorder %s11, 0
      %p78 = por %p76, %p77
      %p79 = scmp.ne.s32.totalorder %s68, %s71
      %p80 = scmp.eq.s32.totalorder %s16, 1
      %p81 = por %p79, %p80
      %p82 = scmp.ne.s32.totalorder %s71, %s72
      %p83 = scmp.eq.s32.totalorder %s16, 0
      %p84 = por %p82, %p83
      %p85 = scmp.ne.s32.totalorder %s71, %s72
      %p86 = scmp.eq.s32.totalorder %s17, 1
      %p87 = por %p85, %p86
      %p89 = scmp.ne.s32.totalorder %s72, %s88
      %p90 = scmp.eq.s32.totalorder %s17, 0
      %p91 = por %p89, %p90
      %p92 = scmp.le.s32.totalorder 1, %s11
      %p93 = scmp.lt.s32.totalorder %s11, 3
      %p94 = pnand %p92, %p93
      %p95 = pneg %p94
      // Predicated region
      $region9: #{_position_embedding_random_impl.1} parent=5 // pred_check
        _
      $region10: #{_position_embedding_random_impl.1} parent=5 // pred_check_branch
        %97 = sbr.rel (%p94) target = $region12
      $region11: #{_position_embedding_random_impl.1} parent=5 // pred_region
        %s98 = ssub.s32 %s11, 1
        // Predicated region
        $region13: #{_position_embedding_random_impl.1} parent=11 // pred_check
          %p99 = pneg %p58
        $region14: #{_position_embedding_random_impl.1} parent=11 // pred_check_branch
          %101 = sbr.rel (%p99) target = $region16
        $region15: #{_position_embedding_random_impl.1} parent=11 // pred_region
          _
        $region16: #{_position_embedding_random_impl.1} parent=11 // pred_fallthru
          _
      $region12: #{_position_embedding_random_impl.1} parent=5 // pred_fallthru
        _
      %p102 = scmp.lt.s32.totalorder %s11, 2
      // Predicated region
      $region17: #{_position_embedding_random_impl.1} parent=5 // pred_check
        %p103 = pneg %p102
      $region18: #{_position_embedding_random_impl.1} parent=5 // pred_check_branch
        %105 = sbr.rel (%p103) target = $region20
      $region19: #{_position_embedding_random_impl.1} parent=5 // pred_region
        // Predicated region
        $region21: #{_position_embedding_random_impl.1} parent=19 // pred_check
          %p106 = pneg %p31
        $region22: #{_position_embedding_random_impl.1} parent=19 // pred_check_branch
          %108 = sbr.rel (%p106) target = $region24
        $region23: #{_position_embedding_random_impl.1} parent=19 // pred_region
          %s109 = smul.u32 8, %s11
          %p110 = scmp.lt.s32.totalorder %s109, 15
          %s111 = scalar_select %p110, %s109, 15
          %s112 = scalar_lea.vmem %s0, %s111
          %s113 = smul.u32 8, %s11
        $region24: #{_position_embedding_random_impl.1} parent=19 // pred_fallthru
          _
      $region20: #{_position_embedding_random_impl.1} parent=5 // pred_fallthru
        _
      %p114 = scmp.le.s32.totalorder 1, %s11
      %p115 = scmp.lt.s32.totalorder %s11, 3
      %p116 = pnand %p114, %p115
      %p117 = pneg %p116
      // Predicated region
      $region25: #{_position_embedding_random_impl.1} parent=5 // pred_check
        _
      $region26: #{_position_embedding_random_impl.1} parent=5 // pred_check_branch
        %119 = sbr.rel (%p116) target = $region28
      $region27: #{_position_embedding_random_impl.1} parent=5 // pred_region
        %s120 = ssub.s32 %s11, 1
        %s121 = smul.u32 8, %s16
        %p122 = scmp.lt.s32.totalorder %s121, 15
        %s123 = scalar_select %p122, %s121, 15
        %s124 = scalar_lea.vmem %s0, %s123
        %p125 = pneg %p37
        %p126 = pneg %p34
        %p127 = pneg %p58
        %p128 = pneg %p55
        %p129 = pneg %p84
        %p130 = pneg %p81
        %s131 = sand.u32 %s71, 1
        %s132 = scalar_lea.sflag [#allocation3], %s131
        %s133 = sand.u32 %s71, 1
        %s134 = smul.addr %s133, 128
        %s135 = scalar_lea.vmem [#allocation2], %s134
        %s136 = smul.u32 8, %s16
        %p137 = scmp.lt.s32.totalorder %s136, 15
        %s138 = scalar_select %p137, %s136, 15
        %s139 = scalar_lea.vmem %s0, %s138
        %s140 = smul.u32 8, %s16
        %s141 = smul.u32 8, %s16
        %v142 = vld [vmem:[%s139] sm:$0x1]
        %v143 = vld [vmem:[%s139 + $0x1] sm:$0x1]
        %v144 = vld [vmem:[%s139 + $0x2] sm:$0x1]
        %v145 = vld [vmem:[%s139 + $0x3] sm:$0x1]
        %v146 = vld [vmem:[%s139 + $0x4] sm:$0x1]
        %v147 = vld [vmem:[%s139 + $0x5] sm:$0x1]
        %v148 = vld [vmem:[%s139 + $0x6] sm:$0x1]
        %v149 = vld [vmem:[%s139 + $0x7] sm:$0x1]
        %v150 = vld [vmem:[%s1] sm:$0xff]
        %v151 = vld [vmem:[%s1 + $0x8] sm:$0xff]
        %v160 = vlaneseq
        %v161 = vshrl.u32 %v160, 7
        %v162 = vsub.s32 0, %v161
        %v163 = vrot.slane %v142, %v162
        %v164 = vlaneseq
        %v165 = vshrl.u32 %v164, 7
        %v166 = vsub.s32 0, %v165
        %v167 = vrot.slane %v143, %v166
        %v168 = vlaneseq
        %v169 = vshrl.u32 %v168, 7
        %v170 = vsub.s32 0, %v169
        %v171 = vrot.slane %v144, %v170
        %v172 = vlaneseq
        %v173 = vshrl.u32 %v172, 7
        %v174 = vsub.s32 0, %v173
        %v175 = vrot.slane %v145, %v174
        %v176 = vlaneseq
        %v177 = vshrl.u32 %v176, 7
        %v178 = vsub.s32 0, %v177
        %v179 = vrot.slane %v146, %v178
        %v180 = vlaneseq
        %v181 = vshrl.u32 %v180, 7
        %v182 = vsub.s32 0, %v181
        %v183 = vrot.slane %v147, %v182
        %v184 = vlaneseq
        %v185 = vshrl.u32 %v184, 7
        %v186 = vsub.s32 0, %v185
        %v187 = vrot.slane %v148, %v186
        %v188 = vlaneseq
        %v189 = vshrl.u32 %v188, 7
        %v190 = vsub.s32 0, %v189
        %v191 = vrot.slane %v149, %v190
        %v200 = vadd.f32 %v163, %v150
        %v201 = vadd.f32 %v163, %v151
        %v202 = vadd.f32 %v167, %v150
        %v203 = vadd.f32 %v167, %v151
        %v204 = vadd.f32 %v171, %v150
        %v205 = vadd.f32 %v171, %v151
        %v206 = vadd.f32 %v175, %v150
        %v207 = vadd.f32 %v175, %v151
        %v208 = vadd.f32 %v179, %v150
        %v209 = vadd.f32 %v179, %v151
        %v210 = vadd.f32 %v183, %v150
        %v211 = vadd.f32 %v183, %v151
        %v212 = vadd.f32 %v187, %v150
        %v213 = vadd.f32 %v187, %v151
        %v214 = vadd.f32 %v191, %v150
        %v215 = vadd.f32 %v191, %v151
        %v216 = vand.u32 2147483647, %v200
        %vm217 = vcmp.le.f32.partialorder %v216, 0.7853982
        %vm218 = vcmp.lt.s32.totalorder %v200, 0
        %v219 = vand.u32 %v200, 2139095040
        %v220 = vshrl.u32 %v219, 23
        %v221 = vsub.s32 %v220, 127
        %v222 = vand.u32 2147483647, %v200
        %v223 = vand.u32 %v222, 8388607
        %v224 = vor.u32 %v223, 8388608
        %v225 = vsub.s32 0, %v224
        %v226 = vadd.s32 %v221, 1
        %vm227 = vcmp.gt.s32.totalorder %v226, 0
        %v228 = vsel %vm227, %v226, 0
        %v229 = vshrl.u32 %v228, 5
        %v230 = vand.u32 %v228, 31
        %v231 = vsub.s32 32, %v230
        %v232 = vshrl.u32 683565275, %v231
        %v233 = vshll.u32 683565275, %v230
        %v234 = vshrl.u32 2475754826, %v231
        %v235 = vor.u32 %v233, %v234
        %v236 = vshll.u32 2475754826, %v230
        %v237 = vshrl.u32 2131351028, %v231
        %v238 = vor.u32 %v236, %v237
        %v239 = vshll.u32 2131351028, %v230
        %v240 = vshrl.u32 2102212464, %v231
        %v241 = vor.u32 %v239, %v240
        %v242 = vshll.u32 2102212464, %v230
        %v243 = vshrl.u32 920167782, %v231
        %v244 = vor.u32 %v242, %v243
        %v245 = vshll.u32 920167782, %v230
        %v246 = vshrl.u32 1326507024, %v231
        %v247 = vor.u32 %v245, %v246
        %vm248 = vcmp.lt.s32.totalorder %v229, 1
        %vm249 = vcmp.lt.s32.totalorder %v229, 2
        %vm250 = vcmp.lt.s32.totalorder %v229, 3
        %vm251 = vcmp.lt.s32.totalorder %v229, 4
        %v252 = vsel %vm248, %v232, %v235
        %v253 = vsel %vm251, %v241, 2102212464
        %v254 = vsel %vm250, %v238, %v253
        %v255 = vsel %vm249, %v252, %v254
        %v256 = vsel %vm248, %v235, %v238
        %v257 = vsel %vm251, %v244, 920167782
        %v258 = vsel %vm250, %v241, %v257
        %v259 = vsel %vm249, %v256, %v258
        %v260 = vsel %vm248, %v238, %v241
        %v261 = vsel %vm251, %v247, 1326507024
        %v262 = vsel %vm250, %v244, %v261
        %v263 = vsel %vm249, %v260, %v262
        %v264 = vshll.u32 %v224, 8
        %v265 = vmul.u32.u64.compose %v264, %v263
        %v266 = vextract.low.u32 %v265
        %v267 = vextract.high.u32 %v265
        %v268 = vmul.u32.u64.compose %v264, %v259
        %v269 = vextract.low.u32 %v268
        %v270 = vextract.high.u32 %v268
        %v271 = vmul.u32 %v264, %v255
        %v272 = vadd.s32 %v267, %v269
        %vm273 = vc.u32 %v267, %v269
        %v274 = vadd.s32 %v270, 1
        %v275 = vsel %vm273, %v274, %v270
        %v276 = vadd.s32 %v271, %v275
        %v277 = vadd.s32 %v276, 536870912
        %v278 = vshrl.u32 %v277, 30
        %v279 = vshll.u32 %v278, 30
        %v280 = vsub.s32 %v276, %v279
        %vm281 = vcmp.lt.s32.totalorder %v280, 0
        %v282 = vsub.s32 0, %v280
        %v283 = vsel %vm281, %v282, %v280
        %v284 = vclz %v283
        %v285 = vsub.s32 %v284, 2
        %vm286 = vcmp.gt.s32.totalorder 0, %v285
        %v287 = vsel %vm286, 0, %v285
        %v288 = vsub.s32 32, %v287
        %v289 = vshll.u32 %v280, %v287
        %v290 = vshrl.u32 %v272, %v288
        %v291 = vor.u32 %v289, %v290
        %v292 = vsub.s32 4294967266, %v287
        %v293 = vadd.s32 %v292, 127
        %v294 = vshll.u32 %v293, 23
        %v295 = vor.u32 4788187, %v294
        %v296 = vand.u32 2147483647, %v295
        %v298 = vcvt.s32.f32 %v291
        %v299 = vmul.f32 %v298, %v296
        %v300 = vxor.u32 %v299, 2147483648
        %v301 = vsel %vm218, %v300, %v299
        %v302 = vsub.s32 4, %v278
        %v303 = vsel %vm218, %v302, %v278
        %v304 = vsel %vm217, %v200, %v301
        %v305 = vsel %vm217, 0, %v303
        %v306 = vcosq.f32.pop %v304
        %v307 = vsinq.f32.pop %v304
        %vm308 = vweird.f32 %v200
        %v309 = vadd.s32 %v305, 3
        %v310 = vand.u32 %v309, 3
        %vm311 = vcmp.lt.s32.totalorder %v310, 2
        %vm312 = vcmp.eq.s32.totalorder %v310, 0
        %v313 = vxor.u32 %v307, 2147483648
        %v314 = vsel %vm312, %v306, %v313
        %vm315 = vcmp.eq.s32.totalorder %v310, 2
        %v316 = vxor.u32 %v306, 2147483648
        %v317 = vsel %vm315, %v316, %v307
        %v318 = vsel %vm311, %v314, %v317
        %v319 = vsel %vm308, nan, %v318
        %v320 = vand.u32 2147483647, %v201
        %vm321 = vcmp.le.f32.partialorder %v320, 0.7853982
        %vm322 = vcmp.lt.s32.totalorder %v201, 0
        %v323 = vand.u32 %v201, 2139095040
        %v324 = vshrl.u32 %v323, 23
        %v325 = vsub.s32 %v324, 127
        %v326 = vand.u32 2147483647, %v201
        %v327 = vand.u32 %v326, 8388607
        %v328 = vor.u32 %v327, 8388608
        %v329 = vsub.s32 0, %v328
        %v330 = vadd.s32 %v325, 1
        %vm331 = vcmp.gt.s32.totalorder %v330, 0
        %v332 = vsel %vm331, %v330, 0
        %v333 = vshrl.u32 %v332, 5
        %v334 = vand.u32 %v332, 31
        %v335 = vsub.s32 32, %v334
        %v336 = vshrl.u32 683565275, %v335
        %v337 = vshll.u32 683565275, %v334
        %v338 = vshrl.u32 2475754826, %v335
        %v339 = vor.u32 %v337, %v338
        %v340 = vshll.u32 2475754826, %v334
        %v341 = vshrl.u32 2131351028, %v335
        %v342 = vor.u32 %v340, %v341
        %v343 = vshll.u32 2131351028, %v334
        %v344 = vshrl.u32 2102212464, %v335
        %v345 = vor.u32 %v343, %v344
        %v346 = vshll.u32 2102212464, %v334
        %v347 = vshrl.u32 920167782, %v335
        %v348 = vor.u32 %v346, %v347
        %v349 = vshll.u32 920167782, %v334
        %v350 = vshrl.u32 1326507024, %v335
        %v351 = vor.u32 %v349, %v350
        %vm352 = vcmp.lt.s32.totalorder %v333, 1
        %vm353 = vcmp.lt.s32.totalorder %v333, 2
        %vm354 = vcmp.lt.s32.totalorder %v333, 3
        %vm355 = vcmp.lt.s32.totalorder %v333, 4
        %v356 = vsel %vm352, %v336, %v339
        %v357 = vsel %vm355, %v345, 2102212464
        %v358 = vsel %vm354, %v342, %v357
        %v359 = vsel %vm353, %v356, %v358
        %v360 = vsel %vm352, %v339, %v342
        %v361 = vsel %vm355, %v348, 920167782
        %v362 = vsel %vm354, %v345, %v361
        %v363 = vsel %vm353, %v360, %v362
        %v364 = vsel %vm352, %v342, %v345
        %v365 = vsel %vm355, %v351, 1326507024
        %v366 = vsel %vm354, %v348, %v365
        %v367 = vsel %vm353, %v364, %v366
        %v368 = vshll.u32 %v328, 8
        %v369 = vmul.u32.u64.compose %v368, %v367
        %v370 = vextract.low.u32 %v369
        %v371 = vextract.high.u32 %v369
        %v372 = vmul.u32.u64.compose %v368, %v363
        %v373 = vextract.low.u32 %v372
        %v374 = vextract.high.u32 %v372
        %v375 = vmul.u32 %v368, %v359
        %v376 = vadd.s32 %v371, %v373
        %vm377 = vc.u32 %v371, %v373
        %v378 = vadd.s32 %v374, 1
        %v379 = vsel %vm377, %v378, %v374
        %v380 = vadd.s32 %v375, %v379
        %v381 = vadd.s32 %v380, 536870912
        %v382 = vshrl.u32 %v381, 30
        %v383 = vshll.u32 %v382, 30
        %v384 = vsub.s32 %v380, %v383
        %vm385 = vcmp.lt.s32.totalorder %v384, 0
        %v386 = vsub.s32 0, %v384
        %v387 = vsel %vm385, %v386, %v384
        %v388 = vclz %v387
        %v389 = vsub.s32 %v388, 2
        %vm390 = vcmp.gt.s32.totalorder 0, %v389
        %v391 = vsel %vm390, 0, %v389
        %v392 = vsub.s32 32, %v391
        %v393 = vshll.u32 %v384, %v391
        %v394 = vshrl.u32 %v376, %v392
        %v395 = vor.u32 %v393, %v394
        %v396 = vsub.s32 4294967266, %v391
        %v397 = vadd.s32 %v396, 127
        %v398 = vshll.u32 %v397, 23
        %v399 = vor.u32 4788187, %v398
        %v400 = vand.u32 2147483647, %v399
        %v402 = vcvt.s32.f32 %v395
        %v403 = vmul.f32 %v402, %v400
        %v404 = vxor.u32 %v403, 2147483648
        %v405 = vsel %vm322, %v404, %v403
        %v406 = vsub.s32 4, %v382
        %v407 = vsel %vm322, %v406, %v382
        %v408 = vsel %vm321, %v201, %v405
        %v409 = vsel %vm321, 0, %v407
        %v410 = vcosq.f32.pop %v408
        %v411 = vsinq.f32.pop %v408
        %vm412 = vweird.f32 %v201
        %v413 = vadd.s32 %v409, 3
        %v414 = vand.u32 %v413, 3
        %vm415 = vcmp.lt.s32.totalorder %v414, 2
        %vm416 = vcmp.eq.s32.totalorder %v414, 0
        %v417 = vxor.u32 %v411, 2147483648
        %v418 = vsel %vm416, %v410, %v417
        %vm419 = vcmp.eq.s32.totalorder %v414, 2
        %v420 = vxor.u32 %v410, 2147483648
        %v421 = vsel %vm419, %v420, %v411
        %v422 = vsel %vm415, %v418, %v421
        %v423 = vsel %vm412, nan, %v422
        %v424 = vand.u32 2147483647, %v202
        %vm425 = vcmp.le.f32.partialorder %v424, 0.7853982
        %vm426 = vcmp.lt.s32.totalorder %v202, 0
        %v427 = vand.u32 %v202, 2139095040
        %v428 = vshrl.u32 %v427, 23
        %v429 = vsub.s32 %v428, 127
        %v430 = vand.u32 2147483647, %v202
        %v431 = vand.u32 %v430, 8388607
        %v432 = vor.u32 %v431, 8388608
        %v433 = vsub.s32 0, %v432
        %v434 = vadd.s32 %v429, 1
        %vm435 = vcmp.gt.s32.totalorder %v434, 0
        %v436 = vsel %vm435, %v434, 0
        %v437 = vshrl.u32 %v436, 5
        %v438 = vand.u32 %v436, 31
        %v439 = vsub.s32 32, %v438
        %v440 = vshrl.u32 683565275, %v439
        %v441 = vshll.u32 683565275, %v438
        %v442 = vshrl.u32 2475754826, %v439
        %v443 = vor.u32 %v441, %v442
        %v444 = vshll.u32 2475754826, %v438
        %v445 = vshrl.u32 2131351028, %v439
        %v446 = vor.u32 %v444, %v445
        %v447 = vshll.u32 2131351028, %v438
        %v448 = vshrl.u32 2102212464, %v439
        %v449 = vor.u32 %v447, %v448
        %v450 = vshll.u32 2102212464, %v438
        %v451 = vshrl.u32 920167782, %v439
        %v452 = vor.u32 %v450, %v451
        %v453 = vshll.u32 920167782, %v438
        %v454 = vshrl.u32 1326507024, %v439
        %v455 = vor.u32 %v453, %v454
        %vm456 = vcmp.lt.s32.totalorder %v437, 1
        %vm457 = vcmp.lt.s32.totalorder %v437, 2
        %vm458 = vcmp.lt.s32.totalorder %v437, 3
        %vm459 = vcmp.lt.s32.totalorder %v437, 4
        %v460 = vsel %vm456, %v440, %v443
        %v461 = vsel %vm459, %v449, 2102212464
        %v462 = vsel %vm458, %v446, %v461
        %v463 = vsel %vm457, %v460, %v462
        %v464 = vsel %vm456, %v443, %v446
        %v465 = vsel %vm459, %v452, 920167782
        %v466 = vsel %vm458, %v449, %v465
        %v467 = vsel %vm457, %v464, %v466
        %v468 = vsel %vm456, %v446, %v449
        %v469 = vsel %vm459, %v455, 1326507024
        %v470 = vsel %vm458, %v452, %v469
        %v471 = vsel %vm457, %v468, %v470
        %v472 = vshll.u32 %v432, 8
        %v473 = vmul.u32.u64.compose %v472, %v471
        %v474 = vextract.low.u32 %v473
        %v475 = vextract.high.u32 %v473
        %v476 = vmul.u32.u64.compose %v472, %v467
        %v477 = vextract.low.u32 %v476
        %v478 = vextract.high.u32 %v476
        %v479 = vmul.u32 %v472, %v463
        %v480 = vadd.s32 %v475, %v477
        %vm481 = vc.u32 %v475, %v477
        %v482 = vadd.s32 %v478, 1
        %v483 = vsel %vm481, %v482, %v478
        %v484 = vadd.s32 %v479, %v483
        %v485 = vadd.s32 %v484, 536870912
        %v486 = vshrl.u32 %v485, 30
        %v487 = vshll.u32 %v486, 30
        %v488 = vsub.s32 %v484, %v487
        %vm489 = vcmp.lt.s32.totalorder %v488, 0
        %v490 = vsub.s32 0, %v488
        %v491 = vsel %vm489, %v490, %v488
        %v492 = vclz %v491
        %v493 = vsub.s32 %v492, 2
        %vm494 = vcmp.gt.s32.totalorder 0, %v493
        %v495 = vsel %vm494, 0, %v493
        %v496 = vsub.s32 32, %v495
        %v497 = vshll.u32 %v488, %v495
        %v498 = vshrl.u32 %v480, %v496
        %v499 = vor.u32 %v497, %v498
        %v500 = vsub.s32 4294967266, %v495
        %v501 = vadd.s32 %v500, 127
        %v502 = vshll.u32 %v501, 23
        %v503 = vor.u32 4788187, %v502
        %v504 = vand.u32 2147483647, %v503
        %v506 = vcvt.s32.f32 %v499
        %v507 = vmul.f32 %v506, %v504
        %v508 = vxor.u32 %v507, 2147483648
        %v509 = vsel %vm426, %v508, %v507
        %v510 = vsub.s32 4, %v486
        %v511 = vsel %vm426, %v510, %v486
        %v512 = vsel %vm425, %v202, %v509
        %v513 = vsel %vm425, 0, %v511
        %v514 = vcosq.f32.pop %v512
        %v515 = vsinq.f32.pop %v512
        %vm516 = vweird.f32 %v202
        %v517 = vadd.s32 %v513, 3
        %v518 = vand.u32 %v517, 3
        %vm519 = vcmp.lt.s32.totalorder %v518, 2
        %vm520 = vcmp.eq.s32.totalorder %v518, 0
        %v521 = vxor.u32 %v515, 2147483648
        %v522 = vsel %vm520, %v514, %v521
        %vm523 = vcmp.eq.s32.totalorder %v518, 2
        %v524 = vxor.u32 %v514, 2147483648
        %v525 = vsel %vm523, %v524, %v515
        %v526 = vsel %vm519, %v522, %v525
        %v527 = vsel %vm516, nan, %v526
        %v528 = vand.u32 2147483647, %v203
        %vm529 = vcmp.le.f32.partialorder %v528, 0.7853982
        %vm530 = vcmp.lt.s32.totalorder %v203, 0
        %v531 = vand.u32 %v203, 2139095040
        %v532 = vshrl.u32 %v531, 23
        %v533 = vsub.s32 %v532, 127
        %v534 = vand.u32 2147483647, %v203
        %v535 = vand.u32 %v534, 8388607
        %v536 = vor.u32 %v535, 8388608
        %v537 = vsub.s32 0, %v536
        %v538 = vadd.s32 %v533, 1
        %vm539 = vcmp.gt.s32.totalorder %v538, 0
        %v540 = vsel %vm539, %v538, 0
        %v541 = vshrl.u32 %v540, 5
        %v542 = vand.u32 %v540, 31
        %v543 = vsub.s32 32, %v542
        %v544 = vshrl.u32 683565275, %v543
        %v545 = vshll.u32 683565275, %v542
        %v546 = vshrl.u32 2475754826, %v543
        %v547 = vor.u32 %v545, %v546
        %v548 = vshll.u32 2475754826, %v542
        %v549 = vshrl.u32 2131351028, %v543
        %v550 = vor.u32 %v548, %v549
        %v551 = vshll.u32 2131351028, %v542
        %v552 = vshrl.u32 2102212464, %v543
        %v553 = vor.u32 %v551, %v552
        %v554 = vshll.u32 2102212464, %v542
        %v555 = vshrl.u32 920167782, %v543
        %v556 = vor.u32 %v554, %v555
        %v557 = vshll.u32 920167782, %v542
        %v558 = vshrl.u32 1326507024, %v543
        %v559 = vor.u32 %v557, %v558
        %vm560 = vcmp.lt.s32.totalorder %v541, 1
        %vm561 = vcmp.lt.s32.totalorder %v541, 2
        %vm562 = vcmp.lt.s32.totalorder %v541, 3
        %vm563 = vcmp.lt.s32.totalorder %v541, 4
        %v564 = vsel %vm560, %v544, %v547
        %v565 = vsel %vm563, %v553, 2102212464
        %v566 = vsel %vm562, %v550, %v565
        %v567 = vsel %vm561, %v564, %v566
        %v568 = vsel %vm560, %v547, %v550
        %v569 = vsel %vm563, %v556, 920167782
        %v570 = vsel %vm562, %v553, %v569
        %v571 = vsel %vm561, %v568, %v570
        %v572 = vsel %vm560, %v550, %v553
        %v573 = vsel %vm563, %v559, 1326507024
        %v574 = vsel %vm562, %v556, %v573
        %v575 = vsel %vm561, %v572, %v574
        %v576 = vshll.u32 %v536, 8
        %v577 = vmul.u32.u64.compose %v576, %v575
        %v578 = vextract.low.u32 %v577
        %v579 = vextract.high.u32 %v577
        %v580 = vmul.u32.u64.compose %v576, %v571
        %v581 = vextract.low.u32 %v580
        %v582 = vextract.high.u32 %v580
        %v583 = vmul.u32 %v576, %v567
        %v584 = vadd.s32 %v579, %v581
        %vm585 = vc.u32 %v579, %v581
        %v586 = vadd.s32 %v582, 1
        %v587 = vsel %vm585, %v586, %v582
        %v588 = vadd.s32 %v583, %v587
        %v589 = vadd.s32 %v588, 536870912
        %v590 = vshrl.u32 %v589, 30
        %v591 = vshll.u32 %v590, 30
        %v592 = vsub.s32 %v588, %v591
        %vm593 = vcmp.lt.s32.totalorder %v592, 0
        %v594 = vsub.s32 0, %v592
        %v595 = vsel %vm593, %v594, %v592
        %v596 = vclz %v595
        %v597 = vsub.s32 %v596, 2
        %vm598 = vcmp.gt.s32.totalorder 0, %v597
        %v599 = vsel %vm598, 0, %v597
        %v600 = vsub.s32 32, %v599
        %v601 = vshll.u32 %v592, %v599
        %v602 = vshrl.u32 %v584, %v600
        %v603 = vor.u32 %v601, %v602
        %v604 = vsub.s32 4294967266, %v599
        %v605 = vadd.s32 %v604, 127
        %v606 = vshll.u32 %v605, 23
        %v607 = vor.u32 4788187, %v606
        %v608 = vand.u32 2147483647, %v607
        %v610 = vcvt.s32.f32 %v603
        %v611 = vmul.f32 %v610, %v608
        %v612 = vxor.u32 %v611, 2147483648
        %v613 = vsel %vm530, %v612, %v611
        %v614 = vsub.s32 4, %v590
        %v615 = vsel %vm530, %v614, %v590
        %v616 = vsel %vm529, %v203, %v613
        %v617 = vsel %vm529, 0, %v615
        %v618 = vcosq.f32.pop %v616
        %v619 = vsinq.f32.pop %v616
        %vm620 = vweird.f32 %v203
        %v621 = vadd.s32 %v617, 3
        %v622 = vand.u32 %v621, 3
        %vm623 = vcmp.lt.s32.totalorder %v622, 2
        %vm624 = vcmp.eq.s32.totalorder %v622, 0
        %v625 = vxor.u32 %v619, 2147483648
        %v626 = vsel %vm624, %v618, %v625
        %vm627 = vcmp.eq.s32.totalorder %v622, 2
        %v628 = vxor.u32 %v618, 2147483648
        %v629 = vsel %vm627, %v628, %v619
        %v630 = vsel %vm623, %v626, %v629
        %v631 = vsel %vm620, nan, %v630
        %v632 = vand.u32 2147483647, %v204
        %vm633 = vcmp.le.f32.partialorder %v632, 0.7853982
        %vm634 = vcmp.lt.s32.totalorder %v204, 0
        %v635 = vand.u32 %v204, 2139095040
        %v636 = vshrl.u32 %v635, 23
        %v637 = vsub.s32 %v636, 127
        %v638 = vand.u32 2147483647, %v204
        %v639 = vand.u32 %v638, 8388607
        %v640 = vor.u32 %v639, 8388608
        %v641 = vsub.s32 0, %v640
        %v642 = vadd.s32 %v637, 1
        %vm643 = vcmp.gt.s32.totalorder %v642, 0
        %v644 = vsel %vm643, %v642, 0
        %v645 = vshrl.u32 %v644, 5
        %v646 = vand.u32 %v644, 31
        %v647 = vsub.s32 32, %v646
        %v648 = vshrl.u32 683565275, %v647
        %v649 = vshll.u32 683565275, %v646
        %v650 = vshrl.u32 2475754826, %v647
        %v651 = vor.u32 %v649, %v650
        %v652 = vshll.u32 2475754826, %v646
        %v653 = vshrl.u32 2131351028, %v647
        %v654 = vor.u32 %v652, %v653
        %v655 = vshll.u32 2131351028, %v646
        %v656 = vshrl.u32 2102212464, %v647
        %v657 = vor.u32 %v655, %v656
        %v658 = vshll.u32 2102212464, %v646
        %v659 = vshrl.u32 920167782, %v647
        %v660 = vor.u32 %v658, %v659
        %v661 = vshll.u32 920167782, %v646
        %v662 = vshrl.u32 1326507024, %v647
        %v663 = vor.u32 %v661, %v662
        %vm664 = vcmp.lt.s32.totalorder %v645, 1
        %vm665 = vcmp.lt.s32.totalorder %v645, 2
        %vm666 = vcmp.lt.s32.totalorder %v645, 3
        %vm667 = vcmp.lt.s32.totalorder %v645, 4
        %v668 = vsel %vm664, %v648, %v651
        %v669 = vsel %vm667, %v657, 2102212464
        %v670 = vsel %vm666, %v654, %v669
        %v671 = vsel %vm665, %v668, %v670
        %v672 = vsel %vm664, %v651, %v654
        %v673 = vsel %vm667, %v660, 920167782
        %v674 = vsel %vm666, %v657, %v673
        %v675 = vsel %vm665, %v672, %v674
        %v676 = vsel %vm664, %v654, %v657
        %v677 = vsel %vm667, %v663, 1326507024
        %v678 = vsel %vm666, %v660, %v677
        %v679 = vsel %vm665, %v676, %v678
        %v680 = vshll.u32 %v640, 8
        %v681 = vmul.u32.u64.compose %v680, %v679
        %v682 = vextract.low.u32 %v681
        %v683 = vextract.high.u32 %v681
        %v684 = vmul.u32.u64.compose %v680, %v675
        %v685 = vextract.low.u32 %v684
        %v686 = vextract.high.u32 %v684
        %v687 = vmul.u32 %v680, %v671
        %v688 = vadd.s32 %v683, %v685
        %vm689 = vc.u32 %v683, %v685
        %v690 = vadd.s32 %v686, 1
        %v691 = vsel %vm689, %v690, %v686
        %v692 = vadd.s32 %v687, %v691
        %v693 = vadd.s32 %v692, 536870912
        %v694 = vshrl.u32 %v693, 30
        %v695 = vshll.u32 %v694, 30
        %v696 = vsub.s32 %v692, %v695
        %vm697 = vcmp.lt.s32.totalorder %v696, 0
        %v698 = vsub.s32 0, %v696
        %v699 = vsel %vm697, %v698, %v696
        %v700 = vclz %v699
        %v701 = vsub.s32 %v700, 2
        %vm702 = vcmp.gt.s32.totalorder 0, %v701
        %v703 = vsel %vm702, 0, %v701
        %v704 = vsub.s32 32, %v703
        %v705 = vshll.u32 %v696, %v703
        %v706 = vshrl.u32 %v688, %v704
        %v707 = vor.u32 %v705, %v706
        %v708 = vsub.s32 4294967266, %v703
        %v709 = vadd.s32 %v708, 127
        %v710 = vshll.u32 %v709, 23
        %v711 = vor.u32 4788187, %v710
        %v712 = vand.u32 2147483647, %v711
        %v714 = vcvt.s32.f32 %v707
        %v715 = vmul.f32 %v714, %v712
        %v716 = vxor.u32 %v715, 2147483648
        %v717 = vsel %vm634, %v716, %v715
        %v718 = vsub.s32 4, %v694
        %v719 = vsel %vm634, %v718, %v694
        %v720 = vsel %vm633, %v204, %v717
        %v721 = vsel %vm633, 0, %v719
        %v722 = vcosq.f32.pop %v720
        %v723 = vsinq.f32.pop %v720
        %vm724 = vweird.f32 %v204
        %v725 = vadd.s32 %v721, 3
        %v726 = vand.u32 %v725, 3
        %vm727 = vcmp.lt.s32.totalorder %v726, 2
        %vm728 = vcmp.eq.s32.totalorder %v726, 0
        %v729 = vxor.u32 %v723, 2147483648
        %v730 = vsel %vm728, %v722, %v729
        %vm731 = vcmp.eq.s32.totalorder %v726, 2
        %v732 = vxor.u32 %v722, 2147483648
        %v733 = vsel %vm731, %v732, %v723
        %v734 = vsel %vm727, %v730, %v733
        %v735 = vsel %vm724, nan, %v734
        %v736 = vand.u32 2147483647, %v205
        %vm737 = vcmp.le.f32.partialorder %v736, 0.7853982
        %vm738 = vcmp.lt.s32.totalorder %v205, 0
        %v739 = vand.u32 %v205, 2139095040
        %v740 = vshrl.u32 %v739, 23
        %v741 = vsub.s32 %v740, 127
        %v742 = vand.u32 2147483647, %v205
        %v743 = vand.u32 %v742, 8388607
        %v744 = vor.u32 %v743, 8388608
        %v745 = vsub.s32 0, %v744
        %v746 = vadd.s32 %v741, 1
        %vm747 = vcmp.gt.s32.totalorder %v746, 0
        %v748 = vsel %vm747, %v746, 0
        %v749 = vshrl.u32 %v748, 5
        %v750 = vand.u32 %v748, 31
        %v751 = vsub.s32 32, %v750
        %v752 = vshrl.u32 683565275, %v751
        %v753 = vshll.u32 683565275, %v750
        %v754 = vshrl.u32 2475754826, %v751
        %v755 = vor.u32 %v753, %v754
        %v756 = vshll.u32 2475754826, %v750
        %v757 = vshrl.u32 2131351028, %v751
        %v758 = vor.u32 %v756, %v757
        %v759 = vshll.u32 2131351028, %v750
        %v760 = vshrl.u32 2102212464, %v751
        %v761 = vor.u32 %v759, %v760
        %v762 = vshll.u32 2102212464, %v750
        %v763 = vshrl.u32 920167782, %v751
        %v764 = vor.u32 %v762, %v763
        %v765 = vshll.u32 920167782, %v750
        %v766 = vshrl.u32 1326507024, %v751
        %v767 = vor.u32 %v765, %v766
        %vm768 = vcmp.lt.s32.totalorder %v749, 1
        %vm769 = vcmp.lt.s32.totalorder %v749, 2
        %vm770 = vcmp.lt.s32.totalorder %v749, 3
        %vm771 = vcmp.lt.s32.totalorder %v749, 4
        %v772 = vsel %vm768, %v752, %v755
        %v773 = vsel %vm771, %v761, 2102212464
        %v774 = vsel %vm770, %v758, %v773
        %v775 = vsel %vm769, %v772, %v774
        %v776 = vsel %vm768, %v755, %v758
        %v777 = vsel %vm771, %v764, 920167782
        %v778 = vsel %vm770, %v761, %v777
        %v779 = vsel %vm769, %v776, %v778
        %v780 = vsel %vm768, %v758, %v761
        %v781 = vsel %vm771, %v767, 1326507024
        %v782 = vsel %vm770, %v764, %v781
        %v783 = vsel %vm769, %v780, %v782
        %v784 = vshll.u32 %v744, 8
        %v785 = vmul.u32.u64.compose %v784, %v783
        %v786 = vextract.low.u32 %v785
        %v787 = vextract.high.u32 %v785
        %v788 = vmul.u32.u64.compose %v784, %v779
        %v789 = vextract.low.u32 %v788
        %v790 = vextract.high.u32 %v788
        %v791 = vmul.u32 %v784, %v775
        %v792 = vadd.s32 %v787, %v789
        %vm793 = vc.u32 %v787, %v789
        %v794 = vadd.s32 %v790, 1
        %v795 = vsel %vm793, %v794, %v790
        %v796 = vadd.s32 %v791, %v795
        %v797 = vadd.s32 %v796, 536870912
        %v798 = vshrl.u32 %v797, 30
        %v799 = vshll.u32 %v798, 30
        %v800 = vsub.s32 %v796, %v799
        %vm801 = vcmp.lt.s32.totalorder %v800, 0
        %v802 = vsub.s32 0, %v800
        %v803 = vsel %vm801, %v802, %v800
        %v804 = vclz %v803
        %v805 = vsub.s32 %v804, 2
        %vm806 = vcmp.gt.s32.totalorder 0, %v805
        %v807 = vsel %vm806, 0, %v805
        %v808 = vsub.s32 32, %v807
        %v809 = vshll.u32 %v800, %v807
        %v810 = vshrl.u32 %v792, %v808
        %v811 = vor.u32 %v809, %v810
        %v812 = vsub.s32 4294967266, %v807
        %v813 = vadd.s32 %v812, 127
        %v814 = vshll.u32 %v813, 23
        %v815 = vor.u32 4788187, %v814
        %v816 = vand.u32 2147483647, %v815
        %v818 = vcvt.s32.f32 %v811
        %v819 = vmul.f32 %v818, %v816
        %v820 = vxor.u32 %v819, 2147483648
        %v821 = vsel %vm738, %v820, %v819
        %v822 = vsub.s32 4, %v798
        %v823 = vsel %vm738, %v822, %v798
        %v824 = vsel %vm737, %v205, %v821
        %v825 = vsel %vm737, 0, %v823
        %v826 = vcosq.f32.pop %v824
        %v827 = vsinq.f32.pop %v824
        %vm828 = vweird.f32 %v205
        %v829 = vadd.s32 %v825, 3
        %v830 = vand.u32 %v829, 3
        %vm831 = vcmp.lt.s32.totalorder %v830, 2
        %vm832 = vcmp.eq.s32.totalorder %v830, 0
        %v833 = vxor.u32 %v827, 2147483648
        %v834 = vsel %vm832, %v826, %v833
        %vm835 = vcmp.eq.s32.totalorder %v830, 2
        %v836 = vxor.u32 %v826, 2147483648
        %v837 = vsel %vm835, %v836, %v827
        %v838 = vsel %vm831, %v834, %v837
        %v839 = vsel %vm828, nan, %v838
        %v840 = vand.u32 2147483647, %v206
        %vm841 = vcmp.le.f32.partialorder %v840, 0.7853982
        %vm842 = vcmp.lt.s32.totalorder %v206, 0
        %v843 = vand.u32 %v206, 2139095040
        %v844 = vshrl.u32 %v843, 23
        %v845 = vsub.s32 %v844, 127
        %v846 = vand.u32 2147483647, %v206
        %v847 = vand.u32 %v846, 8388607
        %v848 = vor.u32 %v847, 8388608
        %v849 = vsub.s32 0, %v848
        %v850 = vadd.s32 %v845, 1
        %vm851 = vcmp.gt.s32.totalorder %v850, 0
        %v852 = vsel %vm851, %v850, 0
        %v853 = vshrl.u32 %v852, 5
        %v854 = vand.u32 %v852, 31
        %v855 = vsub.s32 32, %v854
        %v856 = vshrl.u32 683565275, %v855
        %v857 = vshll.u32 683565275, %v854
        %v858 = vshrl.u32 2475754826, %v855
        %v859 = vor.u32 %v857, %v858
        %v860 = vshll.u32 2475754826, %v854
        %v861 = vshrl.u32 2131351028, %v855
        %v862 = vor.u32 %v860, %v861
        %v863 = vshll.u32 2131351028, %v854
        %v864 = vshrl.u32 2102212464, %v855
        %v865 = vor.u32 %v863, %v864
        %v866 = vshll.u32 2102212464, %v854
        %v867 = vshrl.u32 920167782, %v855
        %v868 = vor.u32 %v866, %v867
        %v869 = vshll.u32 920167782, %v854
        %v870 = vshrl.u32 1326507024, %v855
        %v871 = vor.u32 %v869, %v870
        %vm872 = vcmp.lt.s32.totalorder %v853, 1
        %vm873 = vcmp.lt.s32.totalorder %v853, 2
        %vm874 = vcmp.lt.s32.totalorder %v853, 3
        %vm875 = vcmp.lt.s32.totalorder %v853, 4
        %v876 = vsel %vm872, %v856, %v859
        %v877 = vsel %vm875, %v865, 2102212464
        %v878 = vsel %vm874, %v862, %v877
        %v879 = vsel %vm873, %v876, %v878
        %v880 = vsel %vm872, %v859, %v862
        %v881 = vsel %vm875, %v868, 920167782
        %v882 = vsel %vm874, %v865, %v881
        %v883 = vsel %vm873, %v880, %v882
        %v884 = vsel %vm872, %v862, %v865
        %v885 = vsel %vm875, %v871, 1326507024
        %v886 = vsel %vm874, %v868, %v885
        %v887 = vsel %vm873, %v884, %v886
        %v888 = vshll.u32 %v848, 8
        %v889 = vmul.u32.u64.compose %v888, %v887
        %v890 = vextract.low.u32 %v889
        %v891 = vextract.high.u32 %v889
        %v892 = vmul.u32.u64.compose %v888, %v883
        %v893 = vextract.low.u32 %v892
        %v894 = vextract.high.u32 %v892
        %v895 = vmul.u32 %v888, %v879
        %v896 = vadd.s32 %v891, %v893
        %vm897 = vc.u32 %v891, %v893
        %v898 = vadd.s32 %v894, 1
        %v899 = vsel %vm897, %v898, %v894
        %v900 = vadd.s32 %v895, %v899
        %v901 = vadd.s32 %v900, 536870912
        %v902 = vshrl.u32 %v901, 30
        %v903 = vshll.u32 %v902, 30
        %v904 = vsub.s32 %v900, %v903
        %vm905 = vcmp.lt.s32.totalorder %v904, 0
        %v906 = vsub.s32 0, %v904
        %v907 = vsel %vm905, %v906, %v904
        %v908 = vclz %v907
        %v909 = vsub.s32 %v908, 2
        %vm910 = vcmp.gt.s32.totalorder 0, %v909
        %v911 = vsel %vm910, 0, %v909
        %v912 = vsub.s32 32, %v911
        %v913 = vshll.u32 %v904, %v911
        %v914 = vshrl.u32 %v896, %v912
        %v915 = vor.u32 %v913, %v914
        %v916 = vsub.s32 4294967266, %v911
        %v917 = vadd.s32 %v916, 127
        %v918 = vshll.u32 %v917, 23
        %v919 = vor.u32 4788187, %v918
        %v920 = vand.u32 2147483647, %v919
        %v922 = vcvt.s32.f32 %v915
        %v923 = vmul.f32 %v922, %v920
        %v924 = vxor.u32 %v923, 2147483648
        %v925 = vsel %vm842, %v924, %v923
        %v926 = vsub.s32 4, %v902
        %v927 = vsel %vm842, %v926, %v902
        %v928 = vsel %vm841, %v206, %v925
        %v929 = vsel %vm841, 0, %v927
        %v930 = vcosq.f32.pop %v928
        %v931 = vsinq.f32.pop %v928
        %vm932 = vweird.f32 %v206
        %v933 = vadd.s32 %v929, 3
        %v934 = vand.u32 %v933, 3
        %vm935 = vcmp.lt.s32.totalorder %v934, 2
        %vm936 = vcmp.eq.s32.totalorder %v934, 0
        %v937 = vxor.u32 %v931, 2147483648
        %v938 = vsel %vm936, %v930, %v937
        %vm939 = vcmp.eq.s32.totalorder %v934, 2
        %v940 = vxor.u32 %v930, 2147483648
        %v941 = vsel %vm939, %v940, %v931
        %v942 = vsel %vm935, %v938, %v941
        %v943 = vsel %vm932, nan, %v942
        %v944 = vand.u32 2147483647, %v207
        %vm945 = vcmp.le.f32.partialorder %v944, 0.7853982
        %vm946 = vcmp.lt.s32.totalorder %v207, 0
        %v947 = vand.u32 %v207, 2139095040
        %v948 = vshrl.u32 %v947, 23
        %v949 = vsub.s32 %v948, 127
        %v950 = vand.u32 2147483647, %v207
        %v951 = vand.u32 %v950, 8388607
        %v952 = vor.u32 %v951, 8388608
        %v953 = vsub.s32 0, %v952
        %v954 = vadd.s32 %v949, 1
        %vm955 = vcmp.gt.s32.totalorder %v954, 0
        %v956 = vsel %vm955, %v954, 0
        %v957 = vshrl.u32 %v956, 5
        %v958 = vand.u32 %v956, 31
        %v959 = vsub.s32 32, %v958
        %v960 = vshrl.u32 683565275, %v959
        %v961 = vshll.u32 683565275, %v958
        %v962 = vshrl.u32 2475754826, %v959
        %v963 = vor.u32 %v961, %v962
        %v964 = vshll.u32 2475754826, %v958
        %v965 = vshrl.u32 2131351028, %v959
        %v966 = vor.u32 %v964, %v965
        %v967 = vshll.u32 2131351028, %v958
        %v968 = vshrl.u32 2102212464, %v959
        %v969 = vor.u32 %v967, %v968
        %v970 = vshll.u32 2102212464, %v958
        %v971 = vshrl.u32 920167782, %v959
        %v972 = vor.u32 %v970, %v971
        %v973 = vshll.u32 920167782, %v958
        %v974 = vshrl.u32 1326507024, %v959
        %v975 = vor.u32 %v973, %v974
        %vm976 = vcmp.lt.s32.totalorder %v957, 1
        %vm977 = vcmp.lt.s32.totalorder %v957, 2
        %vm978 = vcmp.lt.s32.totalorder %v957, 3
        %vm979 = vcmp.lt.s32.totalorder %v957, 4
        %v980 = vsel %vm976, %v960, %v963
        %v981 = vsel %vm979, %v969, 2102212464
        %v982 = vsel %vm978, %v966, %v981
        %v983 = vsel %vm977, %v980, %v982
        %v984 = vsel %vm976, %v963, %v966
        %v985 = vsel %vm979, %v972, 920167782
        %v986 = vsel %vm978, %v969, %v985
        %v987 = vsel %vm977, %v984, %v986
        %v988 = vsel %vm976, %v966, %v969
        %v989 = vsel %vm979, %v975, 1326507024
        %v990 = vsel %vm978, %v972, %v989
        %v991 = vsel %vm977, %v988, %v990
        %v992 = vshll.u32 %v952, 8
        %v993 = vmul.u32.u64.compose %v992, %v991
        %v994 = vextract.low.u32 %v993
        %v995 = vextract.high.u32 %v993
        %v996 = vmul.u32.u64.compose %v992, %v987
        %v997 = vextract.low.u32 %v996
        %v998 = vextract.high.u32 %v996
        %v999 = vmul.u32 %v992, %v983
        %v1000 = vadd.s32 %v995, %v997
        %vm1001 = vc.u32 %v995, %v997
        %v1002 = vadd.s32 %v998, 1
        %v1003 = vsel %vm1001, %v1002, %v998
        %v1004 = vadd.s32 %v999, %v1003
        %v1005 = vadd.s32 %v1004, 536870912
        %v1006 = vshrl.u32 %v1005, 30
        %v1007 = vshll.u32 %v1006, 30
        %v1008 = vsub.s32 %v1004, %v1007
        %vm1009 = vcmp.lt.s32.totalorder %v1008, 0
        %v1010 = vsub.s32 0, %v1008
        %v1011 = vsel %vm1009, %v1010, %v1008
        %v1012 = vclz %v1011
        %v1013 = vsub.s32 %v1012, 2
        %vm1014 = vcmp.gt.s32.totalorder 0, %v1013
        %v1015 = vsel %vm1014, 0, %v1013
        %v1016 = vsub.s32 32, %v1015
        %v1017 = vshll.u32 %v1008, %v1015
        %v1018 = vshrl.u32 %v1000, %v1016
        %v1019 = vor.u32 %v1017, %v1018
        %v1020 = vsub.s32 4294967266, %v1015
        %v1021 = vadd.s32 %v1020, 127
        %v1022 = vshll.u32 %v1021, 23
        %v1023 = vor.u32 4788187, %v1022
        %v1024 = vand.u32 2147483647, %v1023
        %v1026 = vcvt.s32.f32 %v1019
        %v1027 = vmul.f32 %v1026, %v1024
        %v1028 = vxor.u32 %v1027, 2147483648
        %v1029 = vsel %vm946, %v1028, %v1027
        %v1030 = vsub.s32 4, %v1006
        %v1031 = vsel %vm946, %v1030, %v1006
        %v1032 = vsel %vm945, %v207, %v1029
        %v1033 = vsel %vm945, 0, %v1031
        %v1034 = vcosq.f32.pop %v1032
        %v1035 = vsinq.f32.pop %v1032
        %vm1036 = vweird.f32 %v207
        %v1037 = vadd.s32 %v1033, 3
        %v1038 = vand.u32 %v1037, 3
        %vm1039 = vcmp.lt.s32.totalorder %v1038, 2
        %vm1040 = vcmp.eq.s32.totalorder %v1038, 0
        %v1041 = vxor.u32 %v1035, 2147483648
        %v1042 = vsel %vm1040, %v1034, %v1041
        %vm1043 = vcmp.eq.s32.totalorder %v1038, 2
        %v1044 = vxor.u32 %v1034, 2147483648
        %v1045 = vsel %vm1043, %v1044, %v1035
        %v1046 = vsel %vm1039, %v1042, %v1045
        %v1047 = vsel %vm1036, nan, %v1046
        %v1048 = vand.u32 2147483647, %v208
        %vm1049 = vcmp.le.f32.partialorder %v1048, 0.7853982
        %vm1050 = vcmp.lt.s32.totalorder %v208, 0
        %v1051 = vand.u32 %v208, 2139095040
        %v1052 = vshrl.u32 %v1051, 23
        %v1053 = vsub.s32 %v1052, 127
        %v1054 = vand.u32 2147483647, %v208
        %v1055 = vand.u32 %v1054, 8388607
        %v1056 = vor.u32 %v1055, 8388608
        %v1057 = vsub.s32 0, %v1056
        %v1058 = vadd.s32 %v1053, 1
        %vm1059 = vcmp.gt.s32.totalorder %v1058, 0
        %v1060 = vsel %vm1059, %v1058, 0
        %v1061 = vshrl.u32 %v1060, 5
        %v1062 = vand.u32 %v1060, 31
        %v1063 = vsub.s32 32, %v1062
        %v1064 = vshrl.u32 683565275, %v1063
        %v1065 = vshll.u32 683565275, %v1062
        %v1066 = vshrl.u32 2475754826, %v1063
        %v1067 = vor.u32 %v1065, %v1066
        %v1068 = vshll.u32 2475754826, %v1062
        %v1069 = vshrl.u32 2131351028, %v1063
        %v1070 = vor.u32 %v1068, %v1069
        %v1071 = vshll.u32 2131351028, %v1062
        %v1072 = vshrl.u32 2102212464, %v1063
        %v1073 = vor.u32 %v1071, %v1072
        %v1074 = vshll.u32 2102212464, %v1062
        %v1075 = vshrl.u32 920167782, %v1063
        %v1076 = vor.u32 %v1074, %v1075
        %v1077 = vshll.u32 920167782, %v1062
        %v1078 = vshrl.u32 1326507024, %v1063
        %v1079 = vor.u32 %v1077, %v1078
        %vm1080 = vcmp.lt.s32.totalorder %v1061, 1
        %vm1081 = vcmp.lt.s32.totalorder %v1061, 2
        %vm1082 = vcmp.lt.s32.totalorder %v1061, 3
        %vm1083 = vcmp.lt.s32.totalorder %v1061, 4
        %v1084 = vsel %vm1080, %v1064, %v1067
        %v1085 = vsel %vm1083, %v1073, 2102212464
        %v1086 = vsel %vm1082, %v1070, %v1085
        %v1087 = vsel %vm1081, %v1084, %v1086
        %v1088 = vsel %vm1080, %v1067, %v1070
        %v1089 = vsel %vm1083, %v1076, 920167782
        %v1090 = vsel %vm1082, %v1073, %v1089
        %v1091 = vsel %vm1081, %v1088, %v1090
        %v1092 = vsel %vm1080, %v1070, %v1073
        %v1093 = vsel %vm1083, %v1079, 1326507024
        %v1094 = vsel %vm1082, %v1076, %v1093
        %v1095 = vsel %vm1081, %v1092, %v1094
        %v1096 = vshll.u32 %v1056, 8
        %v1097 = vmul.u32.u64.compose %v1096, %v1095
        %v1098 = vextract.low.u32 %v1097
        %v1099 = vextract.high.u32 %v1097
        %v1100 = vmul.u32.u64.compose %v1096, %v1091
        %v1101 = vextract.low.u32 %v1100
        %v1102 = vextract.high.u32 %v1100
        %v1103 = vmul.u32 %v1096, %v1087
        %v1104 = vadd.s32 %v1099, %v1101
        %vm1105 = vc.u32 %v1099, %v1101
        %v1106 = vadd.s32 %v1102, 1
        %v1107 = vsel %vm1105, %v1106, %v1102
        %v1108 = vadd.s32 %v1103, %v1107
        %v1109 = vadd.s32 %v1108, 536870912
        %v1110 = vshrl.u32 %v1109, 30
        %v1111 = vshll.u32 %v1110, 30
        %v1112 = vsub.s32 %v1108, %v1111
        %vm1113 = vcmp.lt.s32.totalorder %v1112, 0
        %v1114 = vsub.s32 0, %v1112
        %v1115 = vsel %vm1113, %v1114, %v1112
        %v1116 = vclz %v1115
        %v1117 = vsub.s32 %v1116, 2
        %vm1118 = vcmp.gt.s32.totalorder 0, %v1117
        %v1119 = vsel %vm1118, 0, %v1117
        %v1120 = vsub.s32 32, %v1119
        %v1121 = vshll.u32 %v1112, %v1119
        %v1122 = vshrl.u32 %v1104, %v1120
        %v1123 = vor.u32 %v1121, %v1122
        %v1124 = vsub.s32 4294967266, %v1119
        %v1125 = vadd.s32 %v1124, 127
        %v1126 = vshll.u32 %v1125, 23
        %v1127 = vor.u32 4788187, %v1126
        %v1128 = vand.u32 2147483647, %v1127
        %v1130 = vcvt.s32.f32 %v1123
        %v1131 = vmul.f32 %v1130, %v1128
        %v1132 = vxor.u32 %v1131, 2147483648
        %v1133 = vsel %vm1050, %v1132, %v1131
        %v1134 = vsub.s32 4, %v1110
        %v1135 = vsel %vm1050, %v1134, %v1110
        %v1136 = vsel %vm1049, %v208, %v1133
        %v1137 = vsel %vm1049, 0, %v1135
        %v1138 = vcosq.f32.pop %v1136
        %v1139 = vsinq.f32.pop %v1136
        %vm1140 = vweird.f32 %v208
        %v1141 = vadd.s32 %v1137, 3
        %v1142 = vand.u32 %v1141, 3
        %vm1143 = vcmp.lt.s32.totalorder %v1142, 2
        %vm1144 = vcmp.eq.s32.totalorder %v1142, 0
        %v1145 = vxor.u32 %v1139, 2147483648
        %v1146 = vsel %vm1144, %v1138, %v1145
        %vm1147 = vcmp.eq.s32.totalorder %v1142, 2
        %v1148 = vxor.u32 %v1138, 2147483648
        %v1149 = vsel %vm1147, %v1148, %v1139
        %v1150 = vsel %vm1143, %v1146, %v1149
        %v1151 = vsel %vm1140, nan, %v1150
        %v1152 = vand.u32 2147483647, %v209
        %vm1153 = vcmp.le.f32.partialorder %v1152, 0.7853982
        %vm1154 = vcmp.lt.s32.totalorder %v209, 0
        %v1155 = vand.u32 %v209, 2139095040
        %v1156 = vshrl.u32 %v1155, 23
        %v1157 = vsub.s32 %v1156, 127
        %v1158 = vand.u32 2147483647, %v209
        %v1159 = vand.u32 %v1158, 8388607
        %v1160 = vor.u32 %v1159, 8388608
        %v1161 = vsub.s32 0, %v1160
        %v1162 = vadd.s32 %v1157, 1
        %vm1163 = vcmp.gt.s32.totalorder %v1162, 0
        %v1164 = vsel %vm1163, %v1162, 0
        %v1165 = vshrl.u32 %v1164, 5
        %v1166 = vand.u32 %v1164, 31
        %v1167 = vsub.s32 32, %v1166
        %v1168 = vshrl.u32 683565275, %v1167
        %v1169 = vshll.u32 683565275, %v1166
        %v1170 = vshrl.u32 2475754826, %v1167
        %v1171 = vor.u32 %v1169, %v1170
        %v1172 = vshll.u32 2475754826, %v1166
        %v1173 = vshrl.u32 2131351028, %v1167
        %v1174 = vor.u32 %v1172, %v1173
        %v1175 = vshll.u32 2131351028, %v1166
        %v1176 = vshrl.u32 2102212464, %v1167
        %v1177 = vor.u32 %v1175, %v1176
        %v1178 = vshll.u32 2102212464, %v1166
        %v1179 = vshrl.u32 920167782, %v1167
        %v1180 = vor.u32 %v1178, %v1179
        %v1181 = vshll.u32 920167782, %v1166
        %v1182 = vshrl.u32 1326507024, %v1167
        %v1183 = vor.u32 %v1181, %v1182
        %vm1184 = vcmp.lt.s32.totalorder %v1165, 1
        %vm1185 = vcmp.lt.s32.totalorder %v1165, 2
        %vm1186 = vcmp.lt.s32.totalorder %v1165, 3
        %vm1187 = vcmp.lt.s32.totalorder %v1165, 4
        %v1188 = vsel %vm1184, %v1168, %v1171
        %v1189 = vsel %vm1187, %v1177, 2102212464
        %v1190 = vsel %vm1186, %v1174, %v1189
        %v1191 = vsel %vm1185, %v1188, %v1190
        %v1192 = vsel %vm1184, %v1171, %v1174
        %v1193 = vsel %vm1187, %v1180, 920167782
        %v1194 = vsel %vm1186, %v1177, %v1193
        %v1195 = vsel %vm1185, %v1192, %v1194
        %v1196 = vsel %vm1184, %v1174, %v1177
        %v1197 = vsel %vm1187, %v1183, 1326507024
        %v1198 = vsel %vm1186, %v1180, %v1197
        %v1199 = vsel %vm1185, %v1196, %v1198
        %v1200 = vshll.u32 %v1160, 8
        %v1201 = vmul.u32.u64.compose %v1200, %v1199
        %v1202 = vextract.low.u32 %v1201
        %v1203 = vextract.high.u32 %v1201
        %v1204 = vmul.u32.u64.compose %v1200, %v1195
        %v1205 = vextract.low.u32 %v1204
        %v1206 = vextract.high.u32 %v1204
        %v1207 = vmul.u32 %v1200, %v1191
        %v1208 = vadd.s32 %v1203, %v1205
        %vm1209 = vc.u32 %v1203, %v1205
        %v1210 = vadd.s32 %v1206, 1
        %v1211 = vsel %vm1209, %v1210, %v1206
        %v1212 = vadd.s32 %v1207, %v1211
        %v1213 = vadd.s32 %v1212, 536870912
        %v1214 = vshrl.u32 %v1213, 30
        %v1215 = vshll.u32 %v1214, 30
        %v1216 = vsub.s32 %v1212, %v1215
        %vm1217 = vcmp.lt.s32.totalorder %v1216, 0
        %v1218 = vsub.s32 0, %v1216
        %v1219 = vsel %vm1217, %v1218, %v1216
        %v1220 = vclz %v1219
        %v1221 = vsub.s32 %v1220, 2
        %vm1222 = vcmp.gt.s32.totalorder 0, %v1221
        %v1223 = vsel %vm1222, 0, %v1221
        %v1224 = vsub.s32 32, %v1223
        %v1225 = vshll.u32 %v1216, %v1223
        %v1226 = vshrl.u32 %v1208, %v1224
        %v1227 = vor.u32 %v1225, %v1226
        %v1228 = vsub.s32 4294967266, %v1223
        %v1229 = vadd.s32 %v1228, 127
        %v1230 = vshll.u32 %v1229, 23
        %v1231 = vor.u32 4788187, %v1230
        %v1232 = vand.u32 2147483647, %v1231
        %v1234 = vcvt.s32.f32 %v1227
        %v1235 = vmul.f32 %v1234, %v1232
        %v1236 = vxor.u32 %v1235, 2147483648
        %v1237 = vsel %vm1154, %v1236, %v1235
        %v1238 = vsub.s32 4, %v1214
        %v1239 = vsel %vm1154, %v1238, %v1214
        %v1240 = vsel %vm1153, %v209, %v1237
        %v1241 = vsel %vm1153, 0, %v1239
        %v1242 = vcosq.f32.pop %v1240
        %v1243 = vsinq.f32.pop %v1240
        %vm1244 = vweird.f32 %v209
        %v1245 = vadd.s32 %v1241, 3
        %v1246 = vand.u32 %v1245, 3
        %vm1247 = vcmp.lt.s32.totalorder %v1246, 2
        %vm1248 = vcmp.eq.s32.totalorder %v1246, 0
        %v1249 = vxor.u32 %v1243, 2147483648
        %v1250 = vsel %vm1248, %v1242, %v1249
        %vm1251 = vcmp.eq.s32.totalorder %v1246, 2
        %v1252 = vxor.u32 %v1242, 2147483648
        %v1253 = vsel %vm1251, %v1252, %v1243
        %v1254 = vsel %vm1247, %v1250, %v1253
        %v1255 = vsel %vm1244, nan, %v1254
        %v1256 = vand.u32 2147483647, %v210
        %vm1257 = vcmp.le.f32.partialorder %v1256, 0.7853982
        %vm1258 = vcmp.lt.s32.totalorder %v210, 0
        %v1259 = vand.u32 %v210, 2139095040
        %v1260 = vshrl.u32 %v1259, 23
        %v1261 = vsub.s32 %v1260, 127
        %v1262 = vand.u32 2147483647, %v210
        %v1263 = vand.u32 %v1262, 8388607
        %v1264 = vor.u32 %v1263, 8388608
        %v1265 = vsub.s32 0, %v1264
        %v1266 = vadd.s32 %v1261, 1
        %vm1267 = vcmp.gt.s32.totalorder %v1266, 0
        %v1268 = vsel %vm1267, %v1266, 0
        %v1269 = vshrl.u32 %v1268, 5
        %v1270 = vand.u32 %v1268, 31
        %v1271 = vsub.s32 32, %v1270
        %v1272 = vshrl.u32 683565275, %v1271
        %v1273 = vshll.u32 683565275, %v1270
        %v1274 = vshrl.u32 2475754826, %v1271
        %v1275 = vor.u32 %v1273, %v1274
        %v1276 = vshll.u32 2475754826, %v1270
        %v1277 = vshrl.u32 2131351028, %v1271
        %v1278 = vor.u32 %v1276, %v1277
        %v1279 = vshll.u32 2131351028, %v1270
        %v1280 = vshrl.u32 2102212464, %v1271
        %v1281 = vor.u32 %v1279, %v1280
        %v1282 = vshll.u32 2102212464, %v1270
        %v1283 = vshrl.u32 920167782, %v1271
        %v1284 = vor.u32 %v1282, %v1283
        %v1285 = vshll.u32 920167782, %v1270
        %v1286 = vshrl.u32 1326507024, %v1271
        %v1287 = vor.u32 %v1285, %v1286
        %vm1288 = vcmp.lt.s32.totalorder %v1269, 1
        %vm1289 = vcmp.lt.s32.totalorder %v1269, 2
        %vm1290 = vcmp.lt.s32.totalorder %v1269, 3
        %vm1291 = vcmp.lt.s32.totalorder %v1269, 4
        %v1292 = vsel %vm1288, %v1272, %v1275
        %v1293 = vsel %vm1291, %v1281, 2102212464
        %v1294 = vsel %vm1290, %v1278, %v1293
        %v1295 = vsel %vm1289, %v1292, %v1294
        %v1296 = vsel %vm1288, %v1275, %v1278
        %v1297 = vsel %vm1291, %v1284, 920167782
        %v1298 = vsel %vm1290, %v1281, %v1297
        %v1299 = vsel %vm1289, %v1296, %v1298
        %v1300 = vsel %vm1288, %v1278, %v1281
        %v1301 = vsel %vm1291, %v1287, 1326507024
        %v1302 = vsel %vm1290, %v1284, %v1301
        %v1303 = vsel %vm1289, %v1300, %v1302
        %v1304 = vshll.u32 %v1264, 8
        %v1305 = vmul.u32.u64.compose %v1304, %v1303
        %v1306 = vextract.low.u32 %v1305
        %v1307 = vextract.high.u32 %v1305
        %v1308 = vmul.u32.u64.compose %v1304, %v1299
        %v1309 = vextract.low.u32 %v1308
        %v1310 = vextract.high.u32 %v1308
        %v1311 = vmul.u32 %v1304, %v1295
        %v1312 = vadd.s32 %v1307, %v1309
        %vm1313 = vc.u32 %v1307, %v1309
        %v1314 = vadd.s32 %v1310, 1
        %v1315 = vsel %vm1313, %v1314, %v1310
        %v1316 = vadd.s32 %v1311, %v1315
        %v1317 = vadd.s32 %v1316, 536870912
        %v1318 = vshrl.u32 %v1317, 30
        %v1319 = vshll.u32 %v1318, 30
        %v1320 = vsub.s32 %v1316, %v1319
        %vm1321 = vcmp.lt.s32.totalorder %v1320, 0
        %v1322 = vsub.s32 0, %v1320
        %v1323 = vsel %vm1321, %v1322, %v1320
        %v1324 = vclz %v1323
        %v1325 = vsub.s32 %v1324, 2
        %vm1326 = vcmp.gt.s32.totalorder 0, %v1325
        %v1327 = vsel %vm1326, 0, %v1325
        %v1328 = vsub.s32 32, %v1327
        %v1329 = vshll.u32 %v1320, %v1327
        %v1330 = vshrl.u32 %v1312, %v1328
        %v1331 = vor.u32 %v1329, %v1330
        %v1332 = vsub.s32 4294967266, %v1327
        %v1333 = vadd.s32 %v1332, 127
        %v1334 = vshll.u32 %v1333, 23
        %v1335 = vor.u32 4788187, %v1334
        %v1336 = vand.u32 2147483647, %v1335
        %v1338 = vcvt.s32.f32 %v1331
        %v1339 = vmul.f32 %v1338, %v1336
        %v1340 = vxor.u32 %v1339, 2147483648
        %v1341 = vsel %vm1258, %v1340, %v1339
        %v1342 = vsub.s32 4, %v1318
        %v1343 = vsel %vm1258, %v1342, %v1318
        %v1344 = vsel %vm1257, %v210, %v1341
        %v1345 = vsel %vm1257, 0, %v1343
        %v1346 = vcosq.f32.pop %v1344
        %v1347 = vsinq.f32.pop %v1344
        %vm1348 = vweird.f32 %v210
        %v1349 = vadd.s32 %v1345, 3
        %v1350 = vand.u32 %v1349, 3
        %vm1351 = vcmp.lt.s32.totalorder %v1350, 2
        %vm1352 = vcmp.eq.s32.totalorder %v1350, 0
        %v1353 = vxor.u32 %v1347, 2147483648
        %v1354 = vsel %vm1352, %v1346, %v1353
        %vm1355 = vcmp.eq.s32.totalorder %v1350, 2
        %v1356 = vxor.u32 %v1346, 2147483648
        %v1357 = vsel %vm1355, %v1356, %v1347
        %v1358 = vsel %vm1351, %v1354, %v1357
        %v1359 = vsel %vm1348, nan, %v1358
        %v1360 = vand.u32 2147483647, %v211
        %vm1361 = vcmp.le.f32.partialorder %v1360, 0.7853982
        %vm1362 = vcmp.lt.s32.totalorder %v211, 0
        %v1363 = vand.u32 %v211, 2139095040
        %v1364 = vshrl.u32 %v1363, 23
        %v1365 = vsub.s32 %v1364, 127
        %v1366 = vand.u32 2147483647, %v211
        %v1367 = vand.u32 %v1366, 8388607
        %v1368 = vor.u32 %v1367, 8388608
        %v1369 = vsub.s32 0, %v1368
        %v1370 = vadd.s32 %v1365, 1
        %vm1371 = vcmp.gt.s32.totalorder %v1370, 0
        %v1372 = vsel %vm1371, %v1370, 0
        %v1373 = vshrl.u32 %v1372, 5
        %v1374 = vand.u32 %v1372, 31
        %v1375 = vsub.s32 32, %v1374
        %v1376 = vshrl.u32 683565275, %v1375
        %v1377 = vshll.u32 683565275, %v1374
        %v1378 = vshrl.u32 2475754826, %v1375
        %v1379 = vor.u32 %v1377, %v1378
        %v1380 = vshll.u32 2475754826, %v1374
        %v1381 = vshrl.u32 2131351028, %v1375
        %v1382 = vor.u32 %v1380, %v1381
        %v1383 = vshll.u32 2131351028, %v1374
        %v1384 = vshrl.u32 2102212464, %v1375
        %v1385 = vor.u32 %v1383, %v1384
        %v1386 = vshll.u32 2102212464, %v1374
        %v1387 = vshrl.u32 920167782, %v1375
        %v1388 = vor.u32 %v1386, %v1387
        %v1389 = vshll.u32 920167782, %v1374
        %v1390 = vshrl.u32 1326507024, %v1375
        %v1391 = vor.u32 %v1389, %v1390
        %vm1392 = vcmp.lt.s32.totalorder %v1373, 1
        %vm1393 = vcmp.lt.s32.totalorder %v1373, 2
        %vm1394 = vcmp.lt.s32.totalorder %v1373, 3
        %vm1395 = vcmp.lt.s32.totalorder %v1373, 4
        %v1396 = vsel %vm1392, %v1376, %v1379
        %v1397 = vsel %vm1395, %v1385, 2102212464
        %v1398 = vsel %vm1394, %v1382, %v1397
        %v1399 = vsel %vm1393, %v1396, %v1398
        %v1400 = vsel %vm1392, %v1379, %v1382
        %v1401 = vsel %vm1395, %v1388, 920167782
        %v1402 = vsel %vm1394, %v1385, %v1401
        %v1403 = vsel %vm1393, %v1400, %v1402
        %v1404 = vsel %vm1392, %v1382, %v1385
        %v1405 = vsel %vm1395, %v1391, 1326507024
        %v1406 = vsel %vm1394, %v1388, %v1405
        %v1407 = vsel %vm1393, %v1404, %v1406
        %v1408 = vshll.u32 %v1368, 8
        %v1409 = vmul.u32.u64.compose %v1408, %v1407
        %v1410 = vextract.low.u32 %v1409
        %v1411 = vextract.high.u32 %v1409
        %v1412 = vmul.u32.u64.compose %v1408, %v1403
        %v1413 = vextract.low.u32 %v1412
        %v1414 = vextract.high.u32 %v1412
        %v1415 = vmul.u32 %v1408, %v1399
        %v1416 = vadd.s32 %v1411, %v1413
        %vm1417 = vc.u32 %v1411, %v1413
        %v1418 = vadd.s32 %v1414, 1
        %v1419 = vsel %vm1417, %v1418, %v1414
        %v1420 = vadd.s32 %v1415, %v1419
        %v1421 = vadd.s32 %v1420, 536870912
        %v1422 = vshrl.u32 %v1421, 30
        %v1423 = vshll.u32 %v1422, 30
        %v1424 = vsub.s32 %v1420, %v1423
        %vm1425 = vcmp.lt.s32.totalorder %v1424, 0
        %v1426 = vsub.s32 0, %v1424
        %v1427 = vsel %vm1425, %v1426, %v1424
        %v1428 = vclz %v1427
        %v1429 = vsub.s32 %v1428, 2
        %vm1430 = vcmp.gt.s32.totalorder 0, %v1429
        %v1431 = vsel %vm1430, 0, %v1429
        %v1432 = vsub.s32 32, %v1431
        %v1433 = vshll.u32 %v1424, %v1431
        %v1434 = vshrl.u32 %v1416, %v1432
        %v1435 = vor.u32 %v1433, %v1434
        %v1436 = vsub.s32 4294967266, %v1431
        %v1437 = vadd.s32 %v1436, 127
        %v1438 = vshll.u32 %v1437, 23
        %v1439 = vor.u32 4788187, %v1438
        %v1440 = vand.u32 2147483647, %v1439
        %v1442 = vcvt.s32.f32 %v1435
        %v1443 = vmul.f32 %v1442, %v1440
        %v1444 = vxor.u32 %v1443, 2147483648
        %v1445 = vsel %vm1362, %v1444, %v1443
        %v1446 = vsub.s32 4, %v1422
        %v1447 = vsel %vm1362, %v1446, %v1422
        %v1448 = vsel %vm1361, %v211, %v1445
        %v1449 = vsel %vm1361, 0, %v1447
        %v1450 = vcosq.f32.pop %v1448
        %v1451 = vsinq.f32.pop %v1448
        %vm1452 = vweird.f32 %v211
        %v1453 = vadd.s32 %v1449, 3
        %v1454 = vand.u32 %v1453, 3
        %vm1455 = vcmp.lt.s32.totalorder %v1454, 2
        %vm1456 = vcmp.eq.s32.totalorder %v1454, 0
        %v1457 = vxor.u32 %v1451, 2147483648
        %v1458 = vsel %vm1456, %v1450, %v1457
        %vm1459 = vcmp.eq.s32.totalorder %v1454, 2
        %v1460 = vxor.u32 %v1450, 2147483648
        %v1461 = vsel %vm1459, %v1460, %v1451
        %v1462 = vsel %vm1455, %v1458, %v1461
        %v1463 = vsel %vm1452, nan, %v1462
        %v1464 = vand.u32 2147483647, %v212
        %vm1465 = vcmp.le.f32.partialorder %v1464, 0.7853982
        %vm1466 = vcmp.lt.s32.totalorder %v212, 0
        %v1467 = vand.u32 %v212, 2139095040
        %v1468 = vshrl.u32 %v1467, 23
        %v1469 = vsub.s32 %v1468, 127
        %v1470 = vand.u32 2147483647, %v212
        %v1471 = vand.u32 %v1470, 8388607
        %v1472 = vor.u32 %v1471, 8388608
        %v1473 = vsub.s32 0, %v1472
        %v1474 = vadd.s32 %v1469, 1
        %vm1475 = vcmp.gt.s32.totalorder %v1474, 0
        %v1476 = vsel %vm1475, %v1474, 0
        %v1477 = vshrl.u32 %v1476, 5
        %v1478 = vand.u32 %v1476, 31
        %v1479 = vsub.s32 32, %v1478
        %v1480 = vshrl.u32 683565275, %v1479
        %v1481 = vshll.u32 683565275, %v1478
        %v1482 = vshrl.u32 2475754826, %v1479
        %v1483 = vor.u32 %v1481, %v1482
        %v1484 = vshll.u32 2475754826, %v1478
        %v1485 = vshrl.u32 2131351028, %v1479
        %v1486 = vor.u32 %v1484, %v1485
        %v1487 = vshll.u32 2131351028, %v1478
        %v1488 = vshrl.u32 2102212464, %v1479
        %v1489 = vor.u32 %v1487, %v1488
        %v1490 = vshll.u32 2102212464, %v1478
        %v1491 = vshrl.u32 920167782, %v1479
        %v1492 = vor.u32 %v1490, %v1491
        %v1493 = vshll.u32 920167782, %v1478
        %v1494 = vshrl.u32 1326507024, %v1479
        %v1495 = vor.u32 %v1493, %v1494
        %vm1496 = vcmp.lt.s32.totalorder %v1477, 1
        %vm1497 = vcmp.lt.s32.totalorder %v1477, 2
        %vm1498 = vcmp.lt.s32.totalorder %v1477, 3
        %vm1499 = vcmp.lt.s32.totalorder %v1477, 4
        %v1500 = vsel %vm1496, %v1480, %v1483
        %v1501 = vsel %vm1499, %v1489, 2102212464
        %v1502 = vsel %vm1498, %v1486, %v1501
        %v1503 = vsel %vm1497, %v1500, %v1502
        %v1504 = vsel %vm1496, %v1483, %v1486
        %v1505 = vsel %vm1499, %v1492, 920167782
        %v1506 = vsel %vm1498, %v1489, %v1505
        %v1507 = vsel %vm1497, %v1504, %v1506
        %v1508 = vsel %vm1496, %v1486, %v1489
        %v1509 = vsel %vm1499, %v1495, 1326507024
        %v1510 = vsel %vm1498, %v1492, %v1509
        %v1511 = vsel %vm1497, %v1508, %v1510
        %v1512 = vshll.u32 %v1472, 8
        %v1513 = vmul.u32.u64.compose %v1512, %v1511
        %v1514 = vextract.low.u32 %v1513
        %v1515 = vextract.high.u32 %v1513
        %v1516 = vmul.u32.u64.compose %v1512, %v1507
        %v1517 = vextract.low.u32 %v1516
        %v1518 = vextract.high.u32 %v1516
        %v1519 = vmul.u32 %v1512, %v1503
        %v1520 = vadd.s32 %v1515, %v1517
        %vm1521 = vc.u32 %v1515, %v1517
        %v1522 = vadd.s32 %v1518, 1
        %v1523 = vsel %vm1521, %v1522, %v1518
        %v1524 = vadd.s32 %v1519, %v1523
        %v1525 = vadd.s32 %v1524, 536870912
        %v1526 = vshrl.u32 %v1525, 30
        %v1527 = vshll.u32 %v1526, 30
        %v1528 = vsub.s32 %v1524, %v1527
        %vm1529 = vcmp.lt.s32.totalorder %v1528, 0
        %v1530 = vsub.s32 0, %v1528
        %v1531 = vsel %vm1529, %v1530, %v1528
        %v1532 = vclz %v1531
        %v1533 = vsub.s32 %v1532, 2
        %vm1534 = vcmp.gt.s32.totalorder 0, %v1533
        %v1535 = vsel %vm1534, 0, %v1533
        %v1536 = vsub.s32 32, %v1535
        %v1537 = vshll.u32 %v1528, %v1535
        %v1538 = vshrl.u32 %v1520, %v1536
        %v1539 = vor.u32 %v1537, %v1538
        %v1540 = vsub.s32 4294967266, %v1535
        %v1541 = vadd.s32 %v1540, 127
        %v1542 = vshll.u32 %v1541, 23
        %v1543 = vor.u32 4788187, %v1542
        %v1544 = vand.u32 2147483647, %v1543
        %v1546 = vcvt.s32.f32 %v1539
        %v1547 = vmul.f32 %v1546, %v1544
        %v1548 = vxor.u32 %v1547, 2147483648
        %v1549 = vsel %vm1466, %v1548, %v1547
        %v1550 = vsub.s32 4, %v1526
        %v1551 = vsel %vm1466, %v1550, %v1526
        %v1552 = vsel %vm1465, %v212, %v1549
        %v1553 = vsel %vm1465, 0, %v1551
        %v1554 = vcosq.f32.pop %v1552
        %v1555 = vsinq.f32.pop %v1552
        %vm1556 = vweird.f32 %v212
        %v1557 = vadd.s32 %v1553, 3
        %v1558 = vand.u32 %v1557, 3
        %vm1559 = vcmp.lt.s32.totalorder %v1558, 2
        %vm1560 = vcmp.eq.s32.totalorder %v1558, 0
        %v1561 = vxor.u32 %v1555, 2147483648
        %v1562 = vsel %vm1560, %v1554, %v1561
        %vm1563 = vcmp.eq.s32.totalorder %v1558, 2
        %v1564 = vxor.u32 %v1554, 2147483648
        %v1565 = vsel %vm1563, %v1564, %v1555
        %v1566 = vsel %vm1559, %v1562, %v1565
        %v1567 = vsel %vm1556, nan, %v1566
        %v1568 = vand.u32 2147483647, %v213
        %vm1569 = vcmp.le.f32.partialorder %v1568, 0.7853982
        %vm1570 = vcmp.lt.s32.totalorder %v213, 0
        %v1571 = vand.u32 %v213, 2139095040
        %v1572 = vshrl.u32 %v1571, 23
        %v1573 = vsub.s32 %v1572, 127
        %v1574 = vand.u32 2147483647, %v213
        %v1575 = vand.u32 %v1574, 8388607
        %v1576 = vor.u32 %v1575, 8388608
        %v1577 = vsub.s32 0, %v1576
        %v1578 = vadd.s32 %v1573, 1
        %vm1579 = vcmp.gt.s32.totalorder %v1578, 0
        %v1580 = vsel %vm1579, %v1578, 0
        %v1581 = vshrl.u32 %v1580, 5
        %v1582 = vand.u32 %v1580, 31
        %v1583 = vsub.s32 32, %v1582
        %v1584 = vshrl.u32 683565275, %v1583
        %v1585 = vshll.u32 683565275, %v1582
        %v1586 = vshrl.u32 2475754826, %v1583
        %v1587 = vor.u32 %v1585, %v1586
        %v1588 = vshll.u32 2475754826, %v1582
        %v1589 = vshrl.u32 2131351028, %v1583
        %v1590 = vor.u32 %v1588, %v1589
        %v1591 = vshll.u32 2131351028, %v1582
        %v1592 = vshrl.u32 2102212464, %v1583
        %v1593 = vor.u32 %v1591, %v1592
        %v1594 = vshll.u32 2102212464, %v1582
        %v1595 = vshrl.u32 920167782, %v1583
        %v1596 = vor.u32 %v1594, %v1595
        %v1597 = vshll.u32 920167782, %v1582
        %v1598 = vshrl.u32 1326507024, %v1583
        %v1599 = vor.u32 %v1597, %v1598
        %vm1600 = vcmp.lt.s32.totalorder %v1581, 1
        %vm1601 = vcmp.lt.s32.totalorder %v1581, 2
        %vm1602 = vcmp.lt.s32.totalorder %v1581, 3
        %vm1603 = vcmp.lt.s32.totalorder %v1581, 4
        %v1604 = vsel %vm1600, %v1584, %v1587
        %v1605 = vsel %vm1603, %v1593, 2102212464
        %v1606 = vsel %vm1602, %v1590, %v1605
        %v1607 = vsel %vm1601, %v1604, %v1606
        %v1608 = vsel %vm1600, %v1587, %v1590
        %v1609 = vsel %vm1603, %v1596, 920167782
        %v1610 = vsel %vm1602, %v1593, %v1609
        %v1611 = vsel %vm1601, %v1608, %v1610
        %v1612 = vsel %vm1600, %v1590, %v1593
        %v1613 = vsel %vm1603, %v1599, 1326507024
        %v1614 = vsel %vm1602, %v1596, %v1613
        %v1615 = vsel %vm1601, %v1612, %v1614
        %v1616 = vshll.u32 %v1576, 8
        %v1617 = vmul.u32.u64.compose %v1616, %v1615
        %v1618 = vextract.low.u32 %v1617
        %v1619 = vextract.high.u32 %v1617
        %v1620 = vmul.u32.u64.compose %v1616, %v1611
        %v1621 = vextract.low.u32 %v1620
        %v1622 = vextract.high.u32 %v1620
        %v1623 = vmul.u32 %v1616, %v1607
        %v1624 = vadd.s32 %v1619, %v1621
        %vm1625 = vc.u32 %v1619, %v1621
        %v1626 = vadd.s32 %v1622, 1
        %v1627 = vsel %vm1625, %v1626, %v1622
        %v1628 = vadd.s32 %v1623, %v1627
        %v1629 = vadd.s32 %v1628, 536870912
        %v1630 = vshrl.u32 %v1629, 30
        %v1631 = vshll.u32 %v1630, 30
        %v1632 = vsub.s32 %v1628, %v1631
        %vm1633 = vcmp.lt.s32.totalorder %v1632, 0
        %v1634 = vsub.s32 0, %v1632
        %v1635 = vsel %vm1633, %v1634, %v1632
        %v1636 = vclz %v1635
        %v1637 = vsub.s32 %v1636, 2
        %vm1638 = vcmp.gt.s32.totalorder 0, %v1637
        %v1639 = vsel %vm1638, 0, %v1637
        %v1640 = vsub.s32 32, %v1639
        %v1641 = vshll.u32 %v1632, %v1639
        %v1642 = vshrl.u32 %v1624, %v1640
        %v1643 = vor.u32 %v1641, %v1642
        %v1644 = vsub.s32 4294967266, %v1639
        %v1645 = vadd.s32 %v1644, 127
        %v1646 = vshll.u32 %v1645, 23
        %v1647 = vor.u32 4788187, %v1646
        %v1648 = vand.u32 2147483647, %v1647
        %v1650 = vcvt.s32.f32 %v1643
        %v1651 = vmul.f32 %v1650, %v1648
        %v1652 = vxor.u32 %v1651, 2147483648
        %v1653 = vsel %vm1570, %v1652, %v1651
        %v1654 = vsub.s32 4, %v1630
        %v1655 = vsel %vm1570, %v1654, %v1630
        %v1656 = vsel %vm1569, %v213, %v1653
        %v1657 = vsel %vm1569, 0, %v1655
        %v1658 = vcosq.f32.pop %v1656
        %v1659 = vsinq.f32.pop %v1656
        %vm1660 = vweird.f32 %v213
        %v1661 = vadd.s32 %v1657, 3
        %v1662 = vand.u32 %v1661, 3
        %vm1663 = vcmp.lt.s32.totalorder %v1662, 2
        %vm1664 = vcmp.eq.s32.totalorder %v1662, 0
        %v1665 = vxor.u32 %v1659, 2147483648
        %v1666 = vsel %vm1664, %v1658, %v1665
        %vm1667 = vcmp.eq.s32.totalorder %v1662, 2
        %v1668 = vxor.u32 %v1658, 2147483648
        %v1669 = vsel %vm1667, %v1668, %v1659
        %v1670 = vsel %vm1663, %v1666, %v1669
        %v1671 = vsel %vm1660, nan, %v1670
        %v1672 = vand.u32 2147483647, %v214
        %vm1673 = vcmp.le.f32.partialorder %v1672, 0.7853982
        %vm1674 = vcmp.lt.s32.totalorder %v214, 0
        %v1675 = vand.u32 %v214, 2139095040
        %v1676 = vshrl.u32 %v1675, 23
        %v1677 = vsub.s32 %v1676, 127
        %v1678 = vand.u32 2147483647, %v214
        %v1679 = vand.u32 %v1678, 8388607
        %v1680 = vor.u32 %v1679, 8388608
        %v1681 = vsub.s32 0, %v1680
        %v1682 = vadd.s32 %v1677, 1
        %vm1683 = vcmp.gt.s32.totalorder %v1682, 0
        %v1684 = vsel %vm1683, %v1682, 0
        %v1685 = vshrl.u32 %v1684, 5
        %v1686 = vand.u32 %v1684, 31
        %v1687 = vsub.s32 32, %v1686
        %v1688 = vshrl.u32 683565275, %v1687
        %v1689 = vshll.u32 683565275, %v1686
        %v1690 = vshrl.u32 2475754826, %v1687
        %v1691 = vor.u32 %v1689, %v1690
        %v1692 = vshll.u32 2475754826, %v1686
        %v1693 = vshrl.u32 2131351028, %v1687
        %v1694 = vor.u32 %v1692, %v1693
        %v1695 = vshll.u32 2131351028, %v1686
        %v1696 = vshrl.u32 2102212464, %v1687
        %v1697 = vor.u32 %v1695, %v1696
        %v1698 = vshll.u32 2102212464, %v1686
        %v1699 = vshrl.u32 920167782, %v1687
        %v1700 = vor.u32 %v1698, %v1699
        %v1701 = vshll.u32 920167782, %v1686
        %v1702 = vshrl.u32 1326507024, %v1687
        %v1703 = vor.u32 %v1701, %v1702
        %vm1704 = vcmp.lt.s32.totalorder %v1685, 1
        %vm1705 = vcmp.lt.s32.totalorder %v1685, 2
        %vm1706 = vcmp.lt.s32.totalorder %v1685, 3
        %vm1707 = vcmp.lt.s32.totalorder %v1685, 4
        %v1708 = vsel %vm1704, %v1688, %v1691
        %v1709 = vsel %vm1707, %v1697, 2102212464
        %v1710 = vsel %vm1706, %v1694, %v1709
        %v1711 = vsel %vm1705, %v1708, %v1710
        %v1712 = vsel %vm1704, %v1691, %v1694
        %v1713 = vsel %vm1707, %v1700, 920167782
        %v1714 = vsel %vm1706, %v1697, %v1713
        %v1715 = vsel %vm1705, %v1712, %v1714
        %v1716 = vsel %vm1704, %v1694, %v1697
        %v1717 = vsel %vm1707, %v1703, 1326507024
        %v1718 = vsel %vm1706, %v1700, %v1717
        %v1719 = vsel %vm1705, %v1716, %v1718
        %v1720 = vshll.u32 %v1680, 8
        %v1721 = vmul.u32.u64.compose %v1720, %v1719
        %v1722 = vextract.low.u32 %v1721
        %v1723 = vextract.high.u32 %v1721
        %v1724 = vmul.u32.u64.compose %v1720, %v1715
        %v1725 = vextract.low.u32 %v1724
        %v1726 = vextract.high.u32 %v1724
        %v1727 = vmul.u32 %v1720, %v1711
        %v1728 = vadd.s32 %v1723, %v1725
        %vm1729 = vc.u32 %v1723, %v1725
        %v1730 = vadd.s32 %v1726, 1
        %v1731 = vsel %vm1729, %v1730, %v1726
        %v1732 = vadd.s32 %v1727, %v1731
        %v1733 = vadd.s32 %v1732, 536870912
        %v1734 = vshrl.u32 %v1733, 30
        %v1735 = vshll.u32 %v1734, 30
        %v1736 = vsub.s32 %v1732, %v1735
        %vm1737 = vcmp.lt.s32.totalorder %v1736, 0
        %v1738 = vsub.s32 0, %v1736
        %v1739 = vsel %vm1737, %v1738, %v1736
        %v1740 = vclz %v1739
        %v1741 = vsub.s32 %v1740, 2
        %vm1742 = vcmp.gt.s32.totalorder 0, %v1741
        %v1743 = vsel %vm1742, 0, %v1741
        %v1744 = vsub.s32 32, %v1743
        %v1745 = vshll.u32 %v1736, %v1743
        %v1746 = vshrl.u32 %v1728, %v1744
        %v1747 = vor.u32 %v1745, %v1746
        %v1748 = vsub.s32 4294967266, %v1743
        %v1749 = vadd.s32 %v1748, 127
        %v1750 = vshll.u32 %v1749, 23
        %v1751 = vor.u32 4788187, %v1750
        %v1752 = vand.u32 2147483647, %v1751
        %v1754 = vcvt.s32.f32 %v1747
        %v1755 = vmul.f32 %v1754, %v1752
        %v1756 = vxor.u32 %v1755, 2147483648
        %v1757 = vsel %vm1674, %v1756, %v1755
        %v1758 = vsub.s32 4, %v1734
        %v1759 = vsel %vm1674, %v1758, %v1734
        %v1760 = vsel %vm1673, %v214, %v1757
        %v1761 = vsel %vm1673, 0, %v1759
        %v1762 = vcosq.f32.pop %v1760
        %v1763 = vsinq.f32.pop %v1760
        %vm1764 = vweird.f32 %v214
        %v1765 = vadd.s32 %v1761, 3
        %v1766 = vand.u32 %v1765, 3
        %vm1767 = vcmp.lt.s32.totalorder %v1766, 2
        %vm1768 = vcmp.eq.s32.totalorder %v1766, 0
        %v1769 = vxor.u32 %v1763, 2147483648
        %v1770 = vsel %vm1768, %v1762, %v1769
        %vm1771 = vcmp.eq.s32.totalorder %v1766, 2
        %v1772 = vxor.u32 %v1762, 2147483648
        %v1773 = vsel %vm1771, %v1772, %v1763
        %v1774 = vsel %vm1767, %v1770, %v1773
        %v1775 = vsel %vm1764, nan, %v1774
        %v1776 = vand.u32 2147483647, %v215
        %vm1777 = vcmp.le.f32.partialorder %v1776, 0.7853982
        %vm1778 = vcmp.lt.s32.totalorder %v215, 0
        %v1779 = vand.u32 %v215, 2139095040
        %v1780 = vshrl.u32 %v1779, 23
        %v1781 = vsub.s32 %v1780, 127
        %v1782 = vand.u32 2147483647, %v215
        %v1783 = vand.u32 %v1782, 8388607
        %v1784 = vor.u32 %v1783, 8388608
        %v1785 = vsub.s32 0, %v1784
        %v1786 = vadd.s32 %v1781, 1
        %vm1787 = vcmp.gt.s32.totalorder %v1786, 0
        %v1788 = vsel %vm1787, %v1786, 0
        %v1789 = vshrl.u32 %v1788, 5
        %v1790 = vand.u32 %v1788, 31
        %v1791 = vsub.s32 32, %v1790
        %v1792 = vshrl.u32 683565275, %v1791
        %v1793 = vshll.u32 683565275, %v1790
        %v1794 = vshrl.u32 2475754826, %v1791
        %v1795 = vor.u32 %v1793, %v1794
        %v1796 = vshll.u32 2475754826, %v1790
        %v1797 = vshrl.u32 2131351028, %v1791
        %v1798 = vor.u32 %v1796, %v1797
        %v1799 = vshll.u32 2131351028, %v1790
        %v1800 = vshrl.u32 2102212464, %v1791
        %v1801 = vor.u32 %v1799, %v1800
        %v1802 = vshll.u32 2102212464, %v1790
        %v1803 = vshrl.u32 920167782, %v1791
        %v1804 = vor.u32 %v1802, %v1803
        %v1805 = vshll.u32 920167782, %v1790
        %v1806 = vshrl.u32 1326507024, %v1791
        %v1807 = vor.u32 %v1805, %v1806
        %vm1808 = vcmp.lt.s32.totalorder %v1789, 1
        %vm1809 = vcmp.lt.s32.totalorder %v1789, 2
        %vm1810 = vcmp.lt.s32.totalorder %v1789, 3
        %vm1811 = vcmp.lt.s32.totalorder %v1789, 4
        %v1812 = vsel %vm1808, %v1792, %v1795
        %v1813 = vsel %vm1811, %v1801, 2102212464
        %v1814 = vsel %vm1810, %v1798, %v1813
        %v1815 = vsel %vm1809, %v1812, %v1814
        %v1816 = vsel %vm1808, %v1795, %v1798
        %v1817 = vsel %vm1811, %v1804, 920167782
        %v1818 = vsel %vm1810, %v1801, %v1817
        %v1819 = vsel %vm1809, %v1816, %v1818
        %v1820 = vsel %vm1808, %v1798, %v1801
        %v1821 = vsel %vm1811, %v1807, 1326507024
        %v1822 = vsel %vm1810, %v1804, %v1821
        %v1823 = vsel %vm1809, %v1820, %v1822
        %v1824 = vshll.u32 %v1784, 8
        %v1825 = vmul.u32.u64.compose %v1824, %v1823
        %v1826 = vextract.low.u32 %v1825
        %v1827 = vextract.high.u32 %v1825
        %v1828 = vmul.u32.u64.compose %v1824, %v1819
        %v1829 = vextract.low.u32 %v1828
        %v1830 = vextract.high.u32 %v1828
        %v1831 = vmul.u32 %v1824, %v1815
        %v1832 = vadd.s32 %v1827, %v1829
        %vm1833 = vc.u32 %v1827, %v1829
        %v1834 = vadd.s32 %v1830, 1
        %v1835 = vsel %vm1833, %v1834, %v1830
        %v1836 = vadd.s32 %v1831, %v1835
        %v1837 = vadd.s32 %v1836, 536870912
        %v1838 = vshrl.u32 %v1837, 30
        %v1839 = vshll.u32 %v1838, 30
        %v1840 = vsub.s32 %v1836, %v1839
        %vm1841 = vcmp.lt.s32.totalorder %v1840, 0
        %v1842 = vsub.s32 0, %v1840
        %v1843 = vsel %vm1841, %v1842, %v1840
        %v1844 = vclz %v1843
        %v1845 = vsub.s32 %v1844, 2
        %vm1846 = vcmp.gt.s32.totalorder 0, %v1845
        %v1847 = vsel %vm1846, 0, %v1845
        %v1848 = vsub.s32 32, %v1847
        %v1849 = vshll.u32 %v1840, %v1847
        %v1850 = vshrl.u32 %v1832, %v1848
        %v1851 = vor.u32 %v1849, %v1850
        %v1852 = vsub.s32 4294967266, %v1847
        %v1853 = vadd.s32 %v1852, 127
        %v1854 = vshll.u32 %v1853, 23
        %v1855 = vor.u32 4788187, %v1854
        %v1856 = vand.u32 2147483647, %v1855
        %v1858 = vcvt.s32.f32 %v1851
        %v1859 = vmul.f32 %v1858, %v1856
        %v1860 = vxor.u32 %v1859, 2147483648
        %v1861 = vsel %vm1778, %v1860, %v1859
        %v1862 = vsub.s32 4, %v1838
        %v1863 = vsel %vm1778, %v1862, %v1838
        %v1864 = vsel %vm1777, %v215, %v1861
        %v1865 = vsel %vm1777, 0, %v1863
        %v1866 = vcosq.f32.pop %v1864
        %v1867 = vsinq.f32.pop %v1864
        %vm1868 = vweird.f32 %v215
        %v1869 = vadd.s32 %v1865, 3
        %v1870 = vand.u32 %v1869, 3
        %vm1871 = vcmp.lt.s32.totalorder %v1870, 2
        %vm1872 = vcmp.eq.s32.totalorder %v1870, 0
        %v1873 = vxor.u32 %v1867, 2147483648
        %v1874 = vsel %vm1872, %v1866, %v1873
        %vm1875 = vcmp.eq.s32.totalorder %v1870, 2
        %v1876 = vxor.u32 %v1866, 2147483648
        %v1877 = vsel %vm1875, %v1876, %v1867
        %v1878 = vsel %vm1871, %v1874, %v1877
        %v1879 = vsel %vm1868, nan, %v1878
        %1880 = vst [vmem:[%s135] sm:$0xff] %v319
        %1881 = vst [vmem:[%s135 + $0x8] sm:$0xff] %v423
        %1882 = vst [vmem:[%s135 + $0x10] sm:$0xff] %v527
        %1883 = vst [vmem:[%s135 + $0x18] sm:$0xff] %v631
        %1884 = vst [vmem:[%s135 + $0x20] sm:$0xff] %v735
        %1885 = vst [vmem:[%s135 + $0x28] sm:$0xff] %v839
        %1886 = vst [vmem:[%s135 + $0x30] sm:$0xff] %v943
        %1887 = vst [vmem:[%s135 + $0x38] sm:$0xff] %v1047
        %1888 = vst [vmem:[%s135 + $0x40] sm:$0xff] %v1151
        %1889 = vst [vmem:[%s135 + $0x48] sm:$0xff] %v1255
        %1890 = vst [vmem:[%s135 + $0x50] sm:$0xff] %v1359
        %1891 = vst [vmem:[%s135 + $0x58] sm:$0xff] %v1463
        %1892 = vst [vmem:[%s135 + $0x60] sm:$0xff] %v1567
        %1893 = vst [vmem:[%s135 + $0x68] sm:$0xff] %v1671
        %1894 = vst [vmem:[%s135 + $0x70] sm:$0xff] %v1775
        %1895 = vst [vmem:[%s135 + $0x78] sm:$0xff] %v1879
        %s1896 = sand.u32 %s71, 1
        %s1897 = scalar_lea.sflag [#allocation3], %s1896
        %s1898 = sand.u32 %s71, 1
        %s1899 = smul.addr %s1898, 128
        %s1900 = scalar_lea.vmem [#allocation2], %s1899
        // Predicated region
        $region29: #{_position_embedding_random_impl.1} parent=27 // pred_check
          %p1901 = pneg %p81
        $region30: #{_position_embedding_random_impl.1} parent=27 // pred_check_branch
          %1903 = sbr.rel (%p1901) target = $region32
        $region31: #{_position_embedding_random_impl.1} parent=27 // pred_region
          %s1904 = smul.u32 8, %s16
          %s1906 = ssub.s32 2048, 2048
          %1907 = vsyncadd %s1897, %s1906
          %s1908 = smul.addr %s1904, 2
          %s1909 = smul.addr %s1908, 128
          %s1910 = scalar_lea.hbm %s2, %s1909
          %s1911 = sshll.u32 %s1900, 4
          %s1912 = int_to_ptr.vmem [resolvable:$true] %s1911
          %1917 = dma.vmem_to_hbm [thread:$0]  %s1912, 2048, %s1910, %s1897, 128, 128, 8
        $region32: #{_position_embedding_random_impl.1} parent=27 // pred_fallthru
          _
      $region28: #{_position_embedding_random_impl.1} parent=5 // pred_fallthru
        _
      %p1918 = scmp.le.s32.totalorder 2, %s11
      // Predicated region
      $region33: #{_position_embedding_random_impl.1} parent=5 // pred_check
        %p1919 = pneg %p1918
      $region34: #{_position_embedding_random_impl.1} parent=5 // pred_check_branch
        %1921 = sbr.rel (%p1919) target = $region36
      $region35: #{_position_embedding_random_impl.1} parent=5 // pred_region
        %s1922 = ssub.s32 %s11, 2
        // Predicated region
        $region37: #{_position_embedding_random_impl.1} parent=35 // pred_check
          %p1923 = pneg %p87
        $region38: #{_position_embedding_random_impl.1} parent=35 // pred_check_branch
          %1925 = sbr.rel (%p1923) target = $region40
        $region39: #{_position_embedding_random_impl.1} parent=35 // pred_region
          %s1926 = sand.u32 %s72, 1
          %s1927 = scalar_lea.sflag [#allocation3], %s1926
          %s1928 = sand.u32 %s72, 1
          %s1929 = smul.addr %s1928, 128
          %s1930 = scalar_lea.vmem [#allocation2], %s1929
          %1931 = dma.done %s1927, 2048
        $region40: #{_position_embedding_random_impl.1} parent=35 // pred_fallthru
          _
      $region36: #{_position_embedding_random_impl.1} parent=5 // pred_fallthru
        _
    $region6: #{_position_embedding_random_impl.1} parent=1 // loop_footer
      %s15 = sadd.s32 1, %s11
    $region7: #{_position_embedding_random_impl.1} parent=1 // loop_footer_branch
      %10 = sbr.rel target = $region3
    $region8: #{_position_embedding_random_impl.1} parent=1 // loop_exit
      _
    %1932 = vsyncpa [#allocation3], 1
    %s1933 = scalar_lea.sflag [#allocation3], 1
    %1934 = vsyncpa %s1933, 1

</llo_original>
